<compile_context>
chip_gen: v6e
topology: v6e:2x2x1
jax: 0.10.0
libtpu: 0.0.40
codegen_flags: <defaults>
</compile_context>

<pallas_src>
import functools

import jax
import jax.numpy as jnp
from jax import lax
from jax.experimental import pallas as pl
from jax.experimental.pallas import tpu as pltpu

CIN = 3            # node feature dim for both 'gene' and 'cell'
HIDDEN = 64        # hidden_channels
OUT_CHANNELS = 2   # out_channels
LANE = 128         # lane-dense output width
SUBLANE = 8        # f32 sublane multiple

VMEM_SPEC = pl.BlockSpec(memory_space=pltpu.MemorySpace.VMEM)


# ---------------------------------------------------------------------------
# The single fused kernel
# ---------------------------------------------------------------------------
def _hetero_gnn_kernel(
    xg_ref, xc_ref,                       # node features (padded): (Ngp,3), (Ncp,3)
    g_src_ref, g_dst_ref,                 # stacked edges into 'gene' dst: (Eg,1), (1,Eg)
    c_src_ref, c_dst_ref,                 # stacked edges into 'cell' dst: (Ec,1), (1,Ec)
    wsrc_g_ref, wself_g_ref, bconv_g_ref, # gene dst: (6,64) [0.5*wl_gg;0.5*wl_cg], (3,64), (1,64)
    wsrc_c_ref, wself_c_ref, bconv_c_ref, # cell dst: (6,64) [0.5*wl_cc;0.5*wl_gc], (3,64), (1,64)
    whead_g_ref, bhead_g_ref,             # head gene: (64,128),(1,128)  (zero-padded lanes)
    whead_c_ref, bhead_c_ref,             # head cell: (64,128),(1,128)
    og_ref, oc_ref,                       # outputs: (Ngp,128),(Ncp,128)
    *, e_split_gene, e_split_cell,        # static column split between the two relations
):
    f32 = jnp.float32
    xg = xg_ref[...]
    xc = xc_ref[...]
    ngp = xg.shape[0]
    ncp = xc.shape[0]

    def fma3(x3, w, r0):
        """(N,3) x (3,HIDDEN) contraction as 3 VPU broadcast-FMAs (keeps the MXU for the
        (E,N)-sized aggregation matmuls; K=3 would waste the systolic array)."""
        return (x3[:, 0:1] * w[r0 + 0:r0 + 1, :]
                + x3[:, 1:2] * w[r0 + 1:r0 + 2, :]
                + x3[:, 2:3] * w[r0 + 2:r0 + 3, :])

    def fused_mean_agg(src_ref, dst_ref, h_src, n_dst, e_split):
        """Both relations hitting one dst type: per-relation scatter_mean(h_src[src], dst),
        already summed (0.5 HeteroConv-mean is folded into h_src), via two MXU matmuls.
        Padded edges (index -1) never match the iota and drop out of messages and degrees."""
        src = src_ref[...]                                     # (E, 1) int32 (stacked, offset)
        dst = dst_ref[...]                                     # (1, E) int32
        e = src.shape[0]
        n_src = h_src.shape[0]
        src_oh = (src == lax.broadcasted_iota(jnp.int32, (e, n_src), 1)).astype(f32)
        dst_oh = (dst == lax.broadcasted_iota(jnp.int32, (n_dst, e), 0)).astype(f32)
        # per-relation degree normalisation via a column-block mask (no lane-crossing slices)
        col = lax.broadcasted_iota(jnp.int32, (n_dst, e), 1)
        in_a = (col < e_split).astype(f32)
        deg_a = jnp.sum(dst_oh * in_a, axis=1, keepdims=True)
        deg_b = jnp.sum(dst_oh * (1.0 - in_a), axis=1, keepdims=True)
        scale = (in_a / jnp.maximum(deg_a, 1.0)
                 + (1.0 - in_a) / jnp.maximum(deg_b, 1.0))
        dst_oh = dst_oh * scale
        msgs = jnp.dot(src_oh, h_src, preferred_element_type=f32)   # gather      -> (E, 64)
        return jnp.dot(dst_oh, msgs, preferred_element_type=f32)    # scatter-mean-> (n_dst, 64)

    # ---- destination type 'gene': SAGE(gene->gene) + SAGE(cell->gene), HeteroConv 'mean'
    wsrc_g = wsrc_g_ref[...]
    h_src_g = jnp.concatenate([fma3(xg, wsrc_g, 0),    # gene sources via 0.5*wl_gg
                               fma3(xc, wsrc_g, 3)],   # cell sources via 0.5*wl_cg
                              axis=0)                  # (Ngp+Ncp, 64)
    agg_g = fused_mean_agg(g_src_ref, g_dst_ref, h_src_g, ngp, e_split_gene)
    h_g = jnp.maximum(agg_g + fma3(xg, wself_g_ref[...], 0) + bconv_g_ref[...], 0.0)
    og_ref[...] = (jnp.dot(h_g, whead_g_ref[...], preferred_element_type=f32)
                   + bhead_g_ref[...])                 # lane-dense, sublane-aligned store

    # ---- destination type 'cell': SAGE(cell->cell) + SAGE(gene->cell)
    wsrc_c = wsrc_c_ref[...]
    h_src_c = jnp.concatenate([fma3(xc, wsrc_c, 0),    # cell sources via 0.5*wl_cc
                               fma3(xg, wsrc_c, 3)],   # gene sources via 0.5*wl_gc
                              axis=0)                  # (Ncp+Ngp, 64)
    agg_c = fused_mean_agg(c_src_ref, c_dst_ref, h_src_c, ncp, e_split_cell)
    h_c = jnp.maximum(agg_c + fma3(xc, wself_c_ref[...], 0) + bconv_c_ref[...], 0.0)
    oc_ref[...] = (jnp.dot(h_c, whead_c_ref[...], preferred_element_type=f32)
                   + bhead_c_ref[...])


# ---------------------------------------------------------------------------
# Wrapper (jit'ed): padding, parameter fusion, index layout, single pallas_call
# ---------------------------------------------------------------------------
def _round_up(n, m):
    return ((n + m - 1) // m) * m


def _pad_head(w, b, width=LANE):
    """Zero-pad the (HIDDEN, OUT) head to (HIDDEN, 128) so the output store is lane-dense."""
    return (jnp.pad(w, ((0, 0), (0, width - w.shape[1]))),
            jnp.pad(b, ((0, 0), (0, width - b.shape[1]))))


def hetero_gnn_forward(params, x_gene, x_cell, edges):
    n_gene, n_cell = x_gene.shape[0], x_cell.shape[0]
    ngp = _round_up(max(n_gene, 1), SUBLANE)
    ncp = _round_up(max(n_cell, 1), SUBLANE)

    xg = jnp.pad(x_gene.astype(jnp.float32), ((0, ngp - n_gene), (0, 0)))
    xc = jnp.pad(x_cell.astype(jnp.float32), ((0, ncp - n_cell), (0, 0)))

    def prep_rel(e, src_offset):
        """Offset source ids into the stacked source space, pad to a sublane multiple with
        -1 sentinels (they vanish from the in-kernel one-hots)."""
        src, dst = e
        src = src.astype(jnp.int32) + src_offset
        dst = dst.astype(jnp.int32)
        ep = _round_up(max(src.shape[0], 1), SUBLANE)
        pad = ep - src.shape[0]
        src = jnp.pad(src, (0, pad), constant_values=-1)
        dst = jnp.pad(dst, (0, pad), constant_values=-1)
        return src, dst, ep

    gg_s, gg_d, e_gg = prep_rel(edges['gg'], 0)      # src gene -> dst gene
    cg_s, cg_d, _ = prep_rel(edges['cg'], ngp)       # src cell -> dst gene (offset by Ngp)
    cc_s, cc_d, e_cc = prep_rel(edges['cc'], 0)      # src cell -> dst cell
    gc_s, gc_d, _ = prep_rel(edges['gc'], ncp)       # src gene -> dst cell (offset by Ncp)

    g_src = jnp.concatenate([gg_s, cg_s]).reshape(-1, 1)
    g_dst = jnp.concatenate([gg_d, cg_d]).reshape(1, -1)
    c_src = jnp.concatenate([cc_s, gc_s]).reshape(-1, 1)
    c_dst = jnp.concatenate([cc_d, gc_d]).reshape(1, -1)

    # HeteroConv(aggr='mean') 0.5 factor and both relations' weights pre-fused per dst type.
    p = params
    wsrc_g = 0.5 * jnp.concatenate([p['sage_gg']['wl'], p['sage_cg']['wl']], axis=0)  # (6,64)
    wself_g = 0.5 * (p['sage_gg']['wr'] + p['sage_cg']['wr'])                         # (3,64)
    bconv_g = 0.5 * (p['sage_gg']['bl'] + p['sage_cg']['bl'])                         # (1,64)
    wsrc_c = 0.5 * jnp.concatenate([p['sage_cc']['wl'], p['sage_gc']['wl']], axis=0)
    wself_c = 0.5 * (p['sage_cc']['wr'] + p['sage_gc']['wr'])
    bconv_c = 0.5 * (p['sage_cc']['bl'] + p['sage_gc']['bl'])
    whead_g, bhead_g = _pad_head(p['lin_gene']['w'], p['lin_gene']['b'])
    whead_c, bhead_c = _pad_head(p['lin_cell']['w'], p['lin_cell']['b'])

    kernel = functools.partial(_hetero_gnn_kernel,
                               e_split_gene=e_gg, e_split_cell=e_cc)

    out_g_pad, out_c_pad = pl.pallas_call(
        kernel,
        out_shape=(jax.ShapeDtypeStruct((ngp, LANE), jnp.float32),
                   jax.ShapeDtypeStruct((ncp, LANE), jnp.float32)),
        in_specs=[VMEM_SPEC] * 16,
        out_specs=(VMEM_SPEC, VMEM_SPEC),
    )(xg, xc, g_src, g_dst, c_src, c_dst,
      wsrc_g, wself_g, bconv_g, wsrc_c, wself_c, bconv_c,
      whead_g, bhead_g, whead_c, bhead_c)

    return {'gene': out_g_pad[:n_gene, :OUT_CHANNELS],
            'cell': out_c_pad[:n_cell, :OUT_CHANNELS]}


# ---------------------------------------------------------------------------
# Parameters (PyG layout: per-relation SAGEConv lin_l (bias) / lin_r (no bias), per-type head)
# ---------------------------------------------------------------------------
def init_params(key):
    ks = jax.random.split(key, 16)
    w = lambda k, shape: 0.1 * jax.random.normal(k, shape, jnp.float32)

    def sage(k1, k2, k3):
        return {'wl': w(k1, (CIN, HIDDEN)), 'bl': w(k2, (1, HIDDEN)), 'wr': w(k3, (CIN, HIDDEN))}

    return {
        'sage_gg': sage(ks[0], ks[1], ks[2]),     # ('gene','interacts','gene')
        'sage_cc': sage(ks[3], ks[4], ks[5]),     # ('cell','interacts','cell')
        'sage_cg': sage(ks[6], ks[7], ks[8]),     # ('cell','expresses','gene')
        'sage_gc': sage(ks[9], ks[10], ks[11]),   # ('gene','expressed_in','cell')
        'lin_gene': {'w': w(ks[12], (HIDDEN, OUT_CHANNELS)), 'b': w(ks[13], (1, OUT_CHANNELS))},
        'lin_cell': {'w': w(ks[14], (HIDDEN, OUT_CHANNELS)), 'b': w(ks[15], (1, OUT_CHANNELS))},
    }


# ---------------------------------------------------------------------------
# Plain-JAX reference (same semantics as the PyTorch module) for correctness check
# ---------------------------------------------------------------------------
def _reference_forward(params, x_gene, x_cell, edges):
    def sage(p, x_src, x_dst, src, dst):
        n_dst = x_dst.shape[0]
        msg = x_src[src]
        agg = jnp.zeros((n_dst, x_src.shape[1]), jnp.float32).at[dst].add(msg)
        deg = jnp.zeros((n_dst, 1), jnp.float32).at[dst].add(1.0)
        agg = agg / jnp.maximum(deg, 1.0)
        return agg @ p['wl'] + p['bl'] + x_dst @ p['wr']

    out_gg = sage(params['sage_gg'], x_gene, x_gene, *edges['gg'])
    out_cg = sage(params['sage_cg'], x_cell, x_gene, *edges['cg'])
    out_cc = sage(params['sage_cc'], x_cell, x_cell, *edges['cc'])
    out_gc = sage(params['sage_gc'], x_gene, x_cell, *edges['gc'])
    h_gene = jax.nn.relu(0.5 * (out_gg + out_cg))
    h_cell = jax.nn.relu(0.5 * (out_cc + out_gc))
    return {'gene': h_gene @ params['lin_gene']['w'] + params['lin_gene']['b'],
            'cell': h_cell @ params['lin_cell']['w'] + params['lin_cell']['b']}


# ---------------------------------------------------------------------------
if __name__ == "__main__":
    key = jax.random.PRNGKey(0)
    ks = jax.random.split(key, 12)

    n_gene, n_cell = 12, 10
    e_gg, e_cc, e_cg, e_gc = 24, 20, 30, 30

    x_gene = jax.random.normal(ks[0], (n_gene, CIN), jnp.float32)
    x_cell = jax.random.normal(ks[1], (n_cell, CIN), jnp.float32)

    edges = {
        'gg': (jax.random.randint(ks[2], (e_gg,), 0, n_gene, jnp.int32),   # src gene
               jax.random.randint(ks[3], (e_gg,), 0, n_gene, jnp.int32)),  # dst gene
        'cc': (jax.random.randint(ks[4], (e_cc,), 0, n_cell, jnp.int32),
               jax.random.randint(ks[5], (e_cc,), 0, n_cell, jnp.int32)),
        'cg': (jax.random.randint(ks[6], (e_cg,), 0, n_cell, jnp.int32),   # src cell
               jax.random.randint(ks[7], (e_cg,), 0, n_gene, jnp.int32)),  # dst gene
        'gc': (jax.random.randint(ks[8], (e_gc,), 0, n_gene, jnp.int32),   # src gene
               jax.random.randint(ks[9], (e_gc,), 0, n_cell, jnp.int32)),  # dst cell
    }

    params = init_params(ks[10])

    fwd = jax.jit(hetero_gnn_forward)
    out = fwd(params, x_gene, x_cell, edges)
    jax.block_until_ready(out['gene'])
    jax.block_until_ready(out['cell'])

    assert out['gene'].shape == (n_gene, OUT_CHANNELS)
    assert out['cell'].shape == (n_cell, OUT_CHANNELS)
    assert bool(jnp.all(jnp.isfinite(out['gene'])))
    assert bool(jnp.all(jnp.isfinite(out['cell'])))

    ref = _reference_forward(params, x_gene, x_cell, edges)
    assert bool(jnp.allclose(out['gene'], ref['gene'], atol=1e-4, rtol=1e-4))
    assert bool(jnp.allclose(out['cell'], ref['cell'], atol=1e-4, rtol=1e-4))

    print("KERNEL_OK")
</pallas_src>

<mosaic_0001>
module attributes {stable_mosaic.version = 11 : i64} {
  func.func @_hetero_gnn_kernel(%arg0: memref<16x3xf32, #tpu.memory_space<vmem>>, %arg1: memref<16x3xf32, #tpu.memory_space<vmem>>, %arg2: memref<56x1xi32, #tpu.memory_space<vmem>>, %arg3: memref<1x56xi32, #tpu.memory_space<vmem>>, %arg4: memref<56x1xi32, #tpu.memory_space<vmem>>, %arg5: memref<1x56xi32, #tpu.memory_space<vmem>>, %arg6: memref<6x64xf32, #tpu.memory_space<vmem>>, %arg7: memref<3x64xf32, #tpu.memory_space<vmem>>, %arg8: memref<1x64xf32, #tpu.memory_space<vmem>>, %arg9: memref<6x64xf32, #tpu.memory_space<vmem>>, %arg10: memref<3x64xf32, #tpu.memory_space<vmem>>, %arg11: memref<1x64xf32, #tpu.memory_space<vmem>>, %arg12: memref<64x128xf32, #tpu.memory_space<vmem>>, %arg13: memref<1x128xf32, #tpu.memory_space<vmem>>, %arg14: memref<64x128xf32, #tpu.memory_space<vmem>>, %arg15: memref<1x128xf32, #tpu.memory_space<vmem>>, %arg16: memref<16x128xf32, #tpu.memory_space<vmem>>, %arg17: memref<16x128xf32, #tpu.memory_space<vmem>>) attributes {dimension_semantics = [], scalar_prefetch = 0 : i64, scratch_operands = 0 : i64, tpu.core_type = #tpu.core_type<tc>} {
    %c0 = arith.constant 0 : index
    %c0_0 = arith.constant 0 : index
    %0 = vector.load %arg0[%c0, %c0_0] : memref<16x3xf32, #tpu.memory_space<vmem>>, vector<16x3xf32>
    %c0_1 = arith.constant 0 : index
    %c0_2 = arith.constant 0 : index
    %1 = vector.load %arg1[%c0_1, %c0_2] : memref<16x3xf32, #tpu.memory_space<vmem>>, vector<16x3xf32>
    %c0_3 = arith.constant 0 : index
    %c0_4 = arith.constant 0 : index
    %2 = vector.load %arg6[%c0_3, %c0_4] : memref<6x64xf32, #tpu.memory_space<vmem>>, vector<6x64xf32>
    %3 = vector.extract_strided_slice %0 {offsets = [0, 0], sizes = [16, 1], strides = [1, 1]} : vector<16x3xf32> to vector<16x1xf32>
    %4 = vector.extract_strided_slice %2 {offsets = [0, 0], sizes = [1, 64], strides = [1, 1]} : vector<6x64xf32> to vector<1x64xf32>
    %5 = vector.broadcast %3 : vector<16x1xf32> to vector<16x64xf32>
    %6 = vector.broadcast %4 : vector<1x64xf32> to vector<16x64xf32>
    %7 = arith.mulf %5, %6 : vector<16x64xf32>
    %8 = vector.extract_strided_slice %0 {offsets = [0, 1], sizes = [16, 1], strides = [1, 1]} : vector<16x3xf32> to vector<16x1xf32>
    %9 = vector.extract_strided_slice %2 {offsets = [1, 0], sizes = [1, 64], strides = [1, 1]} : vector<6x64xf32> to vector<1x64xf32>
    %10 = vector.broadcast %8 : vector<16x1xf32> to vector<16x64xf32>
    %11 = vector.broadcast %9 : vector<1x64xf32> to vector<16x64xf32>
    %12 = arith.mulf %10, %11 : vector<16x64xf32>
    %13 = arith.addf %7, %12 : vector<16x64xf32>
    %14 = vector.extract_strided_slice %0 {offsets = [0, 2], sizes = [16, 1], strides = [1, 1]} : vector<16x3xf32> to vector<16x1xf32>
    %15 = vector.extract_strided_slice %2 {offsets = [2, 0], sizes = [1, 64], strides = [1, 1]} : vector<6x64xf32> to vector<1x64xf32>
    %16 = vector.broadcast %14 : vector<16x1xf32> to vector<16x64xf32>
    %17 = vector.broadcast %15 : vector<1x64xf32> to vector<16x64xf32>
    %18 = arith.mulf %16, %17 : vector<16x64xf32>
    %19 = arith.addf %13, %18 : vector<16x64xf32>
    %20 = vector.extract_strided_slice %1 {offsets = [0, 0], sizes = [16, 1], strides = [1, 1]} : vector<16x3xf32> to vector<16x1xf32>
    %21 = vector.extract_strided_slice %2 {offsets = [3, 0], sizes = [1, 64], strides = [1, 1]} : vector<6x64xf32> to vector<1x64xf32>
    %22 = vector.broadcast %20 : vector<16x1xf32> to vector<16x64xf32>
    %23 = vector.broadcast %21 : vector<1x64xf32> to vector<16x64xf32>
    %24 = arith.mulf %22, %23 : vector<16x64xf32>
    %25 = vector.extract_strided_slice %1 {offsets = [0, 1], sizes = [16, 1], strides = [1, 1]} : vector<16x3xf32> to vector<16x1xf32>
    %26 = vector.extract_strided_slice %2 {offsets = [4, 0], sizes = [1, 64], strides = [1, 1]} : vector<6x64xf32> to vector<1x64xf32>
    %27 = vector.broadcast %25 : vector<16x1xf32> to vector<16x64xf32>
    %28 = vector.broadcast %26 : vector<1x64xf32> to vector<16x64xf32>
    %29 = arith.mulf %27, %28 : vector<16x64xf32>
    %30 = arith.addf %24, %29 : vector<16x64xf32>
    %31 = vector.extract_strided_slice %1 {offsets = [0, 2], sizes = [16, 1], strides = [1, 1]} : vector<16x3xf32> to vector<16x1xf32>
    %32 = vector.extract_strided_slice %2 {offsets = [5, 0], sizes = [1, 64], strides = [1, 1]} : vector<6x64xf32> to vector<1x64xf32>
    %33 = vector.broadcast %31 : vector<16x1xf32> to vector<16x64xf32>
    %34 = vector.broadcast %32 : vector<1x64xf32> to vector<16x64xf32>
    %35 = arith.mulf %33, %34 : vector<16x64xf32>
    %36 = arith.addf %30, %35 : vector<16x64xf32>
    %37 = tpu.concatenate %19, %36 in 0 : vector<16x64xf32>, vector<16x64xf32> -> vector<32x64xf32>
    %c0_5 = arith.constant 0 : index
    %c0_6 = arith.constant 0 : index
    %38 = vector.load %arg2[%c0_5, %c0_6] : memref<56x1xi32, #tpu.memory_space<vmem>>, vector<56x1xi32>
    %c0_7 = arith.constant 0 : index
    %c0_8 = arith.constant 0 : index
    %39 = vector.load %arg3[%c0_7, %c0_8] : memref<1x56xi32, #tpu.memory_space<vmem>>, vector<1x56xi32>
    %40 = tpu.iota {dimensions = array<i32: 1>} : vector<56x32xi32>
    %41 = vector.broadcast %38 : vector<56x1xi32> to vector<56x32xi32>
    %42 = arith.cmpi eq, %41, %40 : vector<56x32xi32>
    %43 = arith.extui %42 : vector<56x32xi1> to vector<56x32xi32>
    %44 = arith.sitofp %43 : vector<56x32xi32> to vector<56x32xf32>
    %45 = tpu.iota {dimensions = array<i32: 0>} : vector<16x56xi32>
    %46 = vector.broadcast %39 : vector<1x56xi32> to vector<16x56xi32>
    %47 = arith.cmpi eq, %46, %45 : vector<16x56xi32>
    %48 = arith.extui %47 : vector<16x56xi1> to vector<16x56xi32>
    %49 = arith.sitofp %48 : vector<16x56xi32> to vector<16x56xf32>
    %50 = tpu.iota {dimensions = array<i32: 1>} : vector<16x56xi32>
    %c24_i32 = arith.constant 24 : i32
    %51 = vector.broadcast %c24_i32 : i32 to vector<16x56xi32>
    %52 = arith.cmpi slt, %50, %51 : vector<16x56xi32>
    %53 = arith.extui %52 : vector<16x56xi1> to vector<16x56xi32>
    %54 = arith.sitofp %53 : vector<16x56xi32> to vector<16x56xf32>
    %55 = arith.mulf %49, %54 : vector<16x56xf32>
    %cst = arith.constant dense<0.000000e+00> : vector<16xf32>
    %56 = vector.multi_reduction <add>, %55, %cst [1] : vector<16x56xf32> to vector<16xf32>
    %57 = vector.shape_cast %56 : vector<16xf32> to vector<16x1xf32>
    %cst_9 = arith.constant 1.000000e+00 : f32
    %58 = vector.broadcast %cst_9 : f32 to vector<16x56xf32>
    %59 = arith.subf %58, %54 : vector<16x56xf32>
    %60 = arith.mulf %49, %59 : vector<16x56xf32>
    %cst_10 = arith.constant dense<0.000000e+00> : vector<16xf32>
    %61 = vector.multi_reduction <add>, %60, %cst_10 [1] : vector<16x56xf32> to vector<16xf32>
    %62 = vector.shape_cast %61 : vector<16xf32> to vector<16x1xf32>
    %cst_11 = arith.constant 1.000000e+00 : f32
    %63 = vector.broadcast %cst_11 : f32 to vector<16x1xf32>
    %64 = arith.maximumf %57, %63 : vector<16x1xf32>
    %65 = vector.broadcast %64 : vector<16x1xf32> to vector<16x56xf32>
    %66 = arith.divf %54, %65 : vector<16x56xf32>
    %cst_12 = arith.constant 1.000000e+00 : f32
    %67 = vector.broadcast %cst_12 : f32 to vector<16x56xf32>
    %68 = arith.subf %67, %54 : vector<16x56xf32>
    %cst_13 = arith.constant 1.000000e+00 : f32
    %69 = vector.broadcast %cst_13 : f32 to vector<16x1xf32>
    %70 = arith.maximumf %62, %69 : vector<16x1xf32>
    %71 = vector.broadcast %70 : vector<16x1xf32> to vector<16x56xf32>
    %72 = arith.divf %68, %71 : vector<16x56xf32>
    %73 = arith.addf %66, %72 : vector<16x56xf32>
    %74 = arith.mulf %49, %73 : vector<16x56xf32>
    %cst_14 = arith.constant dense<0.000000e+00> : vector<56x64xf32>
    %75 = tpu.matmul %44, %37, %cst_14 {dimension_numbers = #tpu.dot_dimension_numbers<[1], [0], [0], [1], [0, 0, 1, 1], [], []>} : vector<56x32xf32>, vector<32x64xf32>, vector<56x64xf32> -> vector<56x64xf32>
    %cst_15 = arith.constant dense<0.000000e+00> : vector<16x64xf32>
    %76 = tpu.matmul %74, %75, %cst_15 {dimension_numbers = #tpu.dot_dimension_numbers<[1], [0], [0], [1], [0, 0, 1, 1], [], []>} : vector<16x56xf32>, vector<56x64xf32>, vector<16x64xf32> -> vector<16x64xf32>
    %c0_16 = arith.constant 0 : index
    %c0_17 = arith.constant 0 : index
    %77 = vector.load %arg7[%c0_16, %c0_17] : memref<3x64xf32, #tpu.memory_space<vmem>>, vector<3x64xf32>
    %78 = vector.extract_strided_slice %0 {offsets = [0, 0], sizes = [16, 1], strides = [1, 1]} : vector<16x3xf32> to vector<16x1xf32>
    %79 = vector.extract_strided_slice %77 {offsets = [0, 0], sizes = [1, 64], strides = [1, 1]} : vector<3x64xf32> to vector<1x64xf32>
    %80 = vector.broadcast %78 : vector<16x1xf32> to vector<16x64xf32>
    %81 = vector.broadcast %79 : vector<1x64xf32> to vector<16x64xf32>
    %82 = arith.mulf %80, %81 : vector<16x64xf32>
    %83 = vector.extract_strided_slice %0 {offsets = [0, 1], sizes = [16, 1], strides = [1, 1]} : vector<16x3xf32> to vector<16x1xf32>
    %84 = vector.extract_strided_slice %77 {offsets = [1, 0], sizes = [1, 64], strides = [1, 1]} : vector<3x64xf32> to vector<1x64xf32>
    %85 = vector.broadcast %83 : vector<16x1xf32> to vector<16x64xf32>
    %86 = vector.broadcast %84 : vector<1x64xf32> to vector<16x64xf32>
    %87 = arith.mulf %85, %86 : vector<16x64xf32>
    %88 = arith.addf %82, %87 : vector<16x64xf32>
    %89 = vector.extract_strided_slice %0 {offsets = [0, 2], sizes = [16, 1], strides = [1, 1]} : vector<16x3xf32> to vector<16x1xf32>
    %90 = vector.extract_strided_slice %77 {offsets = [2, 0], sizes = [1, 64], strides = [1, 1]} : vector<3x64xf32> to vector<1x64xf32>
    %91 = vector.broadcast %89 : vector<16x1xf32> to vector<16x64xf32>
    %92 = vector.broadcast %90 : vector<1x64xf32> to vector<16x64xf32>
    %93 = arith.mulf %91, %92 : vector<16x64xf32>
    %94 = arith.addf %88, %93 : vector<16x64xf32>
    %95 = arith.addf %76, %94 : vector<16x64xf32>
    %c0_18 = arith.constant 0 : index
    %c0_19 = arith.constant 0 : index
    %96 = vector.load %arg8[%c0_18, %c0_19] : memref<1x64xf32, #tpu.memory_space<vmem>>, vector<1x64xf32>
    %97 = vector.broadcast %96 : vector<1x64xf32> to vector<16x64xf32>
    %98 = arith.addf %95, %97 : vector<16x64xf32>
    %cst_20 = arith.constant 0.000000e+00 : f32
    %99 = vector.broadcast %cst_20 : f32 to vector<16x64xf32>
    %100 = arith.maximumf %98, %99 : vector<16x64xf32>
    %c0_21 = arith.constant 0 : index
    %c0_22 = arith.constant 0 : index
    %101 = vector.load %arg12[%c0_21, %c0_22] : memref<64x128xf32, #tpu.memory_space<vmem>>, vector<64x128xf32>
    %cst_23 = arith.constant dense<0.000000e+00> : vector<16x128xf32>
    %102 = tpu.matmul %100, %101, %cst_23 {dimension_numbers = #tpu.dot_dimension_numbers<[1], [0], [0], [1], [0, 0, 1, 1], [], []>} : vector<16x64xf32>, vector<64x128xf32>, vector<16x128xf32> -> vector<16x128xf32>
    %c0_24 = arith.constant 0 : index
    %c0_25 = arith.constant 0 : index
    %103 = vector.load %arg13[%c0_24, %c0_25] : memref<1x128xf32, #tpu.memory_space<vmem>>, vector<1x128xf32>
    %104 = vector.broadcast %103 : vector<1x128xf32> to vector<16x128xf32>
    %105 = arith.addf %102, %104 : vector<16x128xf32>
    %c0_26 = arith.constant 0 : index
    %c0_27 = arith.constant 0 : index
    %106 = vector.load %arg16[%c0_26, %c0_27] : memref<16x128xf32, #tpu.memory_space<vmem>>, vector<16x128xf32>
    tpu.vector_store %arg16[%c0_26, %c0_27], %105 {strides = array<i32>} : memref<16x128xf32, #tpu.memory_space<vmem>>, vector<16x128xf32>,
    %c0_28 = arith.constant 0 : index
    %c0_29 = arith.constant 0 : index
    %107 = vector.load %arg9[%c0_28, %c0_29] : memref<6x64xf32, #tpu.memory_space<vmem>>, vector<6x64xf32>
    %108 = vector.extract_strided_slice %1 {offsets = [0, 0], sizes = [16, 1], strides = [1, 1]} : vector<16x3xf32> to vector<16x1xf32>
    %109 = vector.extract_strided_slice %107 {offsets = [0, 0], sizes = [1, 64], strides = [1, 1]} : vector<6x64xf32> to vector<1x64xf32>
    %110 = vector.broadcast %108 : vector<16x1xf32> to vector<16x64xf32>
    %111 = vector.broadcast %109 : vector<1x64xf32> to vector<16x64xf32>
    %112 = arith.mulf %110, %111 : vector<16x64xf32>
    %113 = vector.extract_strided_slice %1 {offsets = [0, 1], sizes = [16, 1], strides = [1, 1]} : vector<16x3xf32> to vector<16x1xf32>
    %114 = vector.extract_strided_slice %107 {offsets = [1, 0], sizes = [1, 64], strides = [1, 1]} : vector<6x64xf32> to vector<1x64xf32>
    %115 = vector.broadcast %113 : vector<16x1xf32> to vector<16x64xf32>
    %116 = vector.broadcast %114 : vector<1x64xf32> to vector<16x64xf32>
    %117 = arith.mulf %115, %116 : vector<16x64xf32>
    %118 = arith.addf %112, %117 : vector<16x64xf32>
    %119 = vector.extract_strided_slice %1 {offsets = [0, 2], sizes = [16, 1], strides = [1, 1]} : vector<16x3xf32> to vector<16x1xf32>
    %120 = vector.extract_strided_slice %107 {offsets = [2, 0], sizes = [1, 64], strides = [1, 1]} : vector<6x64xf32> to vector<1x64xf32>
    %121 = vector.broadcast %119 : vector<16x1xf32> to vector<16x64xf32>
    %122 = vector.broadcast %120 : vector<1x64xf32> to vector<16x64xf32>
    %123 = arith.mulf %121, %122 : vector<16x64xf32>
    %124 = arith.addf %118, %123 : vector<16x64xf32>
    %125 = vector.extract_strided_slice %0 {offsets = [0, 0], sizes = [16, 1], strides = [1, 1]} : vector<16x3xf32> to vector<16x1xf32>
    %126 = vector.extract_strided_slice %107 {offsets = [3, 0], sizes = [1, 64], strides = [1, 1]} : vector<6x64xf32> to vector<1x64xf32>
    %127 = vector.broadcast %125 : vector<16x1xf32> to vector<16x64xf32>
    %128 = vector.broadcast %126 : vector<1x64xf32> to vector<16x64xf32>
    %129 = arith.mulf %127, %128 : vector<16x64xf32>
    %130 = vector.extract_strided_slice %0 {offsets = [0, 1], sizes = [16, 1], strides = [1, 1]} : vector<16x3xf32> to vector<16x1xf32>
    %131 = vector.extract_strided_slice %107 {offsets = [4, 0], sizes = [1, 64], strides = [1, 1]} : vector<6x64xf32> to vector<1x64xf32>
    %132 = vector.broadcast %130 : vector<16x1xf32> to vector<16x64xf32>
    %133 = vector.broadcast %131 : vector<1x64xf32> to vector<16x64xf32>
    %134 = arith.mulf %132, %133 : vector<16x64xf32>
    %135 = arith.addf %129, %134 : vector<16x64xf32>
    %136 = vector.extract_strided_slice %0 {offsets = [0, 2], sizes = [16, 1], strides = [1, 1]} : vector<16x3xf32> to vector<16x1xf32>
    %137 = vector.extract_strided_slice %107 {offsets = [5, 0], sizes = [1, 64], strides = [1, 1]} : vector<6x64xf32> to vector<1x64xf32>
    %138 = vector.broadcast %136 : vector<16x1xf32> to vector<16x64xf32>
    %139 = vector.broadcast %137 : vector<1x64xf32> to vector<16x64xf32>
    %140 = arith.mulf %138, %139 : vector<16x64xf32>
    %141 = arith.addf %135, %140 : vector<16x64xf32>
    %142 = tpu.concatenate %124, %141 in 0 : vector<16x64xf32>, vector<16x64xf32> -> vector<32x64xf32>
    %c0_30 = arith.constant 0 : index
    %c0_31 = arith.constant 0 : index
    %143 = vector.load %arg4[%c0_30, %c0_31] : memref<56x1xi32, #tpu.memory_space<vmem>>, vector<56x1xi32>
    %c0_32 = arith.constant 0 : index
    %c0_33 = arith.constant 0 : index
    %144 = vector.load %arg5[%c0_32, %c0_33] : memref<1x56xi32, #tpu.memory_space<vmem>>, vector<1x56xi32>
    %145 = tpu.iota {dimensions = array<i32: 1>} : vector<56x32xi32>
    %146 = vector.broadcast %143 : vector<56x1xi32> to vector<56x32xi32>
    %147 = arith.cmpi eq, %146, %145 : vector<56x32xi32>
    %148 = arith.extui %147 : vector<56x32xi1> to vector<56x32xi32>
    %149 = arith.sitofp %148 : vector<56x32xi32> to vector<56x32xf32>
    %150 = tpu.iota {dimensions = array<i32: 0>} : vector<16x56xi32>
    %151 = vector.broadcast %144 : vector<1x56xi32> to vector<16x56xi32>
    %152 = arith.cmpi eq, %151, %150 : vector<16x56xi32>
    %153 = arith.extui %152 : vector<16x56xi1> to vector<16x56xi32>
    %154 = arith.sitofp %153 : vector<16x56xi32> to vector<16x56xf32>
    %155 = tpu.iota {dimensions = array<i32: 1>} : vector<16x56xi32>
    %c24_i32_34 = arith.constant 24 : i32
    %156 = vector.broadcast %c24_i32_34 : i32 to vector<16x56xi32>
    %157 = arith.cmpi slt, %155, %156 : vector<16x56xi32>
    %158 = arith.extui %157 : vector<16x56xi1> to vector<16x56xi32>
    %159 = arith.sitofp %158 : vector<16x56xi32> to vector<16x56xf32>
    %160 = arith.mulf %154, %159 : vector<16x56xf32>
    %cst_35 = arith.constant dense<0.000000e+00> : vector<16xf32>
    %161 = vector.multi_reduction <add>, %160, %cst_35 [1] : vector<16x56xf32> to vector<16xf32>
    %162 = vector.shape_cast %161 : vector<16xf32> to vector<16x1xf32>
    %cst_36 = arith.constant 1.000000e+00 : f32
    %163 = vector.broadcast %cst_36 : f32 to vector<16x56xf32>
    %164 = arith.subf %163, %159 : vector<16x56xf32>
    %165 = arith.mulf %154, %164 : vector<16x56xf32>
    %cst_37 = arith.constant dense<0.000000e+00> : vector<16xf32>
    %166 = vector.multi_reduction <add>, %165, %cst_37 [1] : vector<16x56xf32> to vector<16xf32>
    %167 = vector.shape_cast %166 : vector<16xf32> to vector<16x1xf32>
    %cst_38 = arith.constant 1.000000e+00 : f32
    %168 = vector.broadcast %cst_38 : f32 to vector<16x1xf32>
    %169 = arith.maximumf %162, %168 : vector<16x1xf32>
    %170 = vector.broadcast %169 : vector<16x1xf32> to vector<16x56xf32>
    %171 = arith.divf %159, %170 : vector<16x56xf32>
    %cst_39 = arith.constant 1.000000e+00 : f32
    %172 = vector.broadcast %cst_39 : f32 to vector<16x56xf32>
    %173 = arith.subf %172, %159 : vector<16x56xf32>
    %cst_40 = arith.constant 1.000000e+00 : f32
    %174 = vector.broadcast %cst_40 : f32 to vector<16x1xf32>
    %175 = arith.maximumf %167, %174 : vector<16x1xf32>
    %176 = vector.broadcast %175 : vector<16x1xf32> to vector<16x56xf32>
    %177 = arith.divf %173, %176 : vector<16x56xf32>
    %178 = arith.addf %171, %177 : vector<16x56xf32>
    %179 = arith.mulf %154, %178 : vector<16x56xf32>
    %cst_41 = arith.constant dense<0.000000e+00> : vector<56x64xf32>
    %180 = tpu.matmul %149, %142, %cst_41 {dimension_numbers = #tpu.dot_dimension_numbers<[1], [0], [0], [1], [0, 0, 1, 1], [], []>} : vector<56x32xf32>, vector<32x64xf32>, vector<56x64xf32> -> vector<56x64xf32>
    %cst_42 = arith.constant dense<0.000000e+00> : vector<16x64xf32>
    %181 = tpu.matmul %179, %180, %cst_42 {dimension_numbers = #tpu.dot_dimension_numbers<[1], [0], [0], [1], [0, 0, 1, 1], [], []>} : vector<16x56xf32>, vector<56x64xf32>, vector<16x64xf32> -> vector<16x64xf32>
    %c0_43 = arith.constant 0 : index
    %c0_44 = arith.constant 0 : index
    %182 = vector.load %arg10[%c0_43, %c0_44] : memref<3x64xf32, #tpu.memory_space<vmem>>, vector<3x64xf32>
    %183 = vector.extract_strided_slice %1 {offsets = [0, 0], sizes = [16, 1], strides = [1, 1]} : vector<16x3xf32> to vector<16x1xf32>
    %184 = vector.extract_strided_slice %182 {offsets = [0, 0], sizes = [1, 64], strides = [1, 1]} : vector<3x64xf32> to vector<1x64xf32>
    %185 = vector.broadcast %183 : vector<16x1xf32> to vector<16x64xf32>
    %186 = vector.broadcast %184 : vector<1x64xf32> to vector<16x64xf32>
    %187 = arith.mulf %185, %186 : vector<16x64xf32>
    %188 = vector.extract_strided_slice %1 {offsets = [0, 1], sizes = [16, 1], strides = [1, 1]} : vector<16x3xf32> to vector<16x1xf32>
    %189 = vector.extract_strided_slice %182 {offsets = [1, 0], sizes = [1, 64], strides = [1, 1]} : vector<3x64xf32> to vector<1x64xf32>
    %190 = vector.broadcast %188 : vector<16x1xf32> to vector<16x64xf32>
    %191 = vector.broadcast %189 : vector<1x64xf32> to vector<16x64xf32>
    %192 = arith.mulf %190, %191 : vector<16x64xf32>
    %193 = arith.addf %187, %192 : vector<16x64xf32>
    %194 = vector.extract_strided_slice %1 {offsets = [0, 2], sizes = [16, 1], strides = [1, 1]} : vector<16x3xf32> to vector<16x1xf32>
    %195 = vector.extract_strided_slice %182 {offsets = [2, 0], sizes = [1, 64], strides = [1, 1]} : vector<3x64xf32> to vector<1x64xf32>
    %196 = vector.broadcast %194 : vector<16x1xf32> to vector<16x64xf32>
    %197 = vector.broadcast %195 : vector<1x64xf32> to vector<16x64xf32>
    %198 = arith.mulf %196, %197 : vector<16x64xf32>
    %199 = arith.addf %193, %198 : vector<16x64xf32>
    %200 = arith.addf %181, %199 : vector<16x64xf32>
    %c0_45 = arith.constant 0 : index
    %c0_46 = arith.constant 0 : index
    %201 = vector.load %arg11[%c0_45, %c0_46] : memref<1x64xf32, #tpu.memory_space<vmem>>, vector<1x64xf32>
    %202 = vector.broadcast %201 : vector<1x64xf32> to vector<16x64xf32>
    %203 = arith.addf %200, %202 : vector<16x64xf32>
    %cst_47 = arith.constant 0.000000e+00 : f32
    %204 = vector.broadcast %cst_47 : f32 to vector<16x64xf32>
    %205 = arith.maximumf %203, %204 : vector<16x64xf32>
    %c0_48 = arith.constant 0 : index
    %c0_49 = arith.constant 0 : index
    %206 = vector.load %arg14[%c0_48, %c0_49] : memref<64x128xf32, #tpu.memory_space<vmem>>, vector<64x128xf32>
    %cst_50 = arith.constant dense<0.000000e+00> : vector<16x128xf32>
    %207 = tpu.matmul %205, %206, %cst_50 {dimension_numbers = #tpu.dot_dimension_numbers<[1], [0], [0], [1], [0, 0, 1, 1], [], []>} : vector<16x64xf32>, vector<64x128xf32>, vector<16x128xf32> -> vector<16x128xf32>
    %c0_51 = arith.constant 0 : index
    %c0_52 = arith.constant 0 : index
    %208 = vector.load %arg15[%c0_51, %c0_52] : memref<1x128xf32, #tpu.memory_space<vmem>>, vector<1x128xf32>
    %209 = vector.broadcast %208 : vector<1x128xf32> to vector<16x128xf32>
    %210 = arith.addf %207, %209 : vector<16x128xf32>
    %c0_53 = arith.constant 0 : index
    %c0_54 = arith.constant 0 : index
    %211 = vector.load %arg17[%c0_53, %c0_54] : memref<16x128xf32, #tpu.memory_space<vmem>>, vector<16x128xf32>
    tpu.vector_store %arg17[%c0_53, %c0_54], %210 {strides = array<i32>} : memref<16x128xf32, #tpu.memory_space<vmem>>, vector<16x128xf32>,
    return
  }
}

</mosaic_0001>

<llo_original>
// kernel: hetero_gnn_forward.1
$region0: #{hetero_gnn_forward.1}
  #allocation0 [shape = 'u32[]', space=smem, size = 0x4, offset = 0x4, fixed_abs, tag = 'smem constant byte address 0x4 - core index']
  #allocation1 [shape = 'u32[144,128]{1,0:T(1,128)}', space=vmem, size = 0x12000, scoped, tag = 'internal scratch']
  %s0 = inlined_call_operand.vmem [shape: f32[16,3], index: 0, kind: input, shape index: {}]
  %s1 = inlined_call_operand.vmem [shape: f32[16,3], index: 1, kind: input, shape index: {}]
  %s2 = inlined_call_operand.vmem [shape: s32[56,1], index: 2, kind: input, shape index: {}]
  %s3 = inlined_call_operand.vmem [shape: s32[1,56], index: 3, kind: input, shape index: {}]
  %s4 = inlined_call_operand.vmem [shape: s32[56,1], index: 4, kind: input, shape index: {}]
  %s5 = inlined_call_operand.vmem [shape: s32[1,56], index: 5, kind: input, shape index: {}]
  %s6 = inlined_call_operand.vmem [shape: f32[6,64], index: 6, kind: input, shape index: {}]
  %s7 = inlined_call_operand.vmem [shape: f32[3,64], index: 7, kind: input, shape index: {}]
  %s8 = inlined_call_operand.vmem [shape: f32[1,64], index: 8, kind: input, shape index: {}]
  %s9 = inlined_call_operand.vmem [shape: f32[6,64], index: 9, kind: input, shape index: {}]
  %s10 = inlined_call_operand.vmem [shape: f32[3,64], index: 10, kind: input, shape index: {}]
  %s11 = inlined_call_operand.vmem [shape: f32[1,64], index: 11, kind: input, shape index: {}]
  %s12 = inlined_call_operand.vmem [shape: f32[64,128], index: 12, kind: input, shape index: {}]
  %s13 = inlined_call_operand.vmem [shape: f32[1,128], index: 13, kind: input, shape index: {}]
  %s14 = inlined_call_operand.vmem [shape: f32[64,128], index: 14, kind: input, shape index: {}]
  %s15 = inlined_call_operand.vmem [shape: f32[1,128], index: 15, kind: input, shape index: {}]
  %s16 = inlined_call_operand.vmem [shape: f32[16,128], index: 16, kind: output, shape index: {0}]
  %s17 = inlined_call_operand.vmem [shape: f32[16,128], index: 17, kind: output, shape index: {1}]
  %18 = xla_tuple %s16, %s17
  %s19 = sld [smem:[#allocation0]]
  $region82: #{hetero_gnn_forward.1} parent=0
    _
  %s21 = ssub.s32 1, %s19
  %s22 = scalar_select 0, %s21, %s19
  // Predicated region
  $region2: #{hetero_gnn_forward.1} parent=0 // pred_check
    _
  $region3: #{hetero_gnn_forward.1} parent=0 // pred_check_branch
    %24 = sbr.rel (0) target = $region5
  $region4: #{hetero_gnn_forward.1} parent=0 // pred_region
    _
  $region5: #{hetero_gnn_forward.1} parent=0 // pred_fallthru
    _
  // Predicated region
  $region6: #{hetero_gnn_forward.1} parent=0 // pred_check
    _
  $region7: #{hetero_gnn_forward.1} parent=0 // pred_check_branch
    %26 = sbr.rel (0) target = $region9
  $region8: #{hetero_gnn_forward.1} parent=0 // pred_region
    _
  $region9: #{hetero_gnn_forward.1} parent=0 // pred_fallthru
    _
  // Predicated region
  $region10: #{hetero_gnn_forward.1} parent=0 // pred_check
    _
  $region11: #{hetero_gnn_forward.1} parent=0 // pred_check_branch
    %28 = sbr.rel (0) target = $region13
  $region12: #{hetero_gnn_forward.1} parent=0 // pred_region
    _
  $region13: #{hetero_gnn_forward.1} parent=0 // pred_fallthru
    _
  // Predicated region
  $region14: #{hetero_gnn_forward.1} parent=0 // pred_check
    _
  $region15: #{hetero_gnn_forward.1} parent=0 // pred_check_branch
    %30 = sbr.rel (0) target = $region17
  $region16: #{hetero_gnn_forward.1} parent=0 // pred_region
    _
  $region17: #{hetero_gnn_forward.1} parent=0 // pred_fallthru
    _
  // Predicated region
  $region18: #{hetero_gnn_forward.1} parent=0 // pred_check
    _
  $region19: #{hetero_gnn_forward.1} parent=0 // pred_check_branch
    %32 = sbr.rel (0) target = $region21
  $region20: #{hetero_gnn_forward.1} parent=0 // pred_region
    _
  $region21: #{hetero_gnn_forward.1} parent=0 // pred_fallthru
    _
  // Predicated region
  $region22: #{hetero_gnn_forward.1} parent=0 // pred_check
    _
  $region23: #{hetero_gnn_forward.1} parent=0 // pred_check_branch
    %34 = sbr.rel (0) target = $region25
  $region24: #{hetero_gnn_forward.1} parent=0 // pred_region
    _
  $region25: #{hetero_gnn_forward.1} parent=0 // pred_fallthru
    _
  // Predicated region
  $region26: #{hetero_gnn_forward.1} parent=0 // pred_check
    _
  $region27: #{hetero_gnn_forward.1} parent=0 // pred_check_branch
    %36 = sbr.rel (0) target = $region29
  $region28: #{hetero_gnn_forward.1} parent=0 // pred_region
    _
  $region29: #{hetero_gnn_forward.1} parent=0 // pred_fallthru
    _
  // Predicated region
  $region30: #{hetero_gnn_forward.1} parent=0 // pred_check
    _
  $region31: #{hetero_gnn_forward.1} parent=0 // pred_check_branch
    %38 = sbr.rel (0) target = $region33
  $region32: #{hetero_gnn_forward.1} parent=0 // pred_region
    _
  $region33: #{hetero_gnn_forward.1} parent=0 // pred_fallthru
    _
  // Predicated region
  $region34: #{hetero_gnn_forward.1} parent=0 // pred_check
    _
  $region35: #{hetero_gnn_forward.1} parent=0 // pred_check_branch
    %40 = sbr.rel (0) target = $region37
  $region36: #{hetero_gnn_forward.1} parent=0 // pred_region
    _
  $region37: #{hetero_gnn_forward.1} parent=0 // pred_fallthru
    _
  // Predicated region
  $region38: #{hetero_gnn_forward.1} parent=0 // pred_check
    _
  $region39: #{hetero_gnn_forward.1} parent=0 // pred_check_branch
    %42 = sbr.rel (0) target = $region41
  $region40: #{hetero_gnn_forward.1} parent=0 // pred_region
    _
  $region41: #{hetero_gnn_forward.1} parent=0 // pred_fallthru
    _
  // Predicated region
  $region42: #{hetero_gnn_forward.1} parent=0 // pred_check
    _
  $region43: #{hetero_gnn_forward.1} parent=0 // pred_check_branch
    %44 = sbr.rel (0) target = $region45
  $region44: #{hetero_gnn_forward.1} parent=0 // pred_region
    _
  $region45: #{hetero_gnn_forward.1} parent=0 // pred_fallthru
    _
  // Predicated region
  $region46: #{hetero_gnn_forward.1} parent=0 // pred_check
    _
  $region47: #{hetero_gnn_forward.1} parent=0 // pred_check_branch
    %46 = sbr.rel (0) target = $region49
  $region48: #{hetero_gnn_forward.1} parent=0 // pred_region
    _
  $region49: #{hetero_gnn_forward.1} parent=0 // pred_fallthru
    _
  // Predicated region
  $region50: #{hetero_gnn_forward.1} parent=0 // pred_check
    _
  $region51: #{hetero_gnn_forward.1} parent=0 // pred_check_branch
    %48 = sbr.rel (0) target = $region53
  $region52: #{hetero_gnn_forward.1} parent=0 // pred_region
    _
  $region53: #{hetero_gnn_forward.1} parent=0 // pred_fallthru
    _
  // Predicated region
  $region54: #{hetero_gnn_forward.1} parent=0 // pred_check
    _
  $region55: #{hetero_gnn_forward.1} parent=0 // pred_check_branch
    %50 = sbr.rel (0) target = $region57
  $region56: #{hetero_gnn_forward.1} parent=0 // pred_region
    _
  $region57: #{hetero_gnn_forward.1} parent=0 // pred_fallthru
    _
  // Predicated region
  $region58: #{hetero_gnn_forward.1} parent=0 // pred_check
    _
  $region59: #{hetero_gnn_forward.1} parent=0 // pred_check_branch
    %52 = sbr.rel (0) target = $region61
  $region60: #{hetero_gnn_forward.1} parent=0 // pred_region
    _
  $region61: #{hetero_gnn_forward.1} parent=0 // pred_fallthru
    _
  // Predicated region
  $region62: #{hetero_gnn_forward.1} parent=0 // pred_check
    _
  $region63: #{hetero_gnn_forward.1} parent=0 // pred_check_branch
    %54 = sbr.rel (0) target = $region65
  $region64: #{hetero_gnn_forward.1} parent=0 // pred_region
    _
  $region65: #{hetero_gnn_forward.1} parent=0 // pred_fallthru
    _
  %v55 = vld [vmem:[%s0] sm:$0xff]
  %v56 = vld [vmem:[%s0 + $0x8] sm:$0xff]
  %v57 = vld [vmem:[%s1] sm:$0xff]
  %v58 = vld [vmem:[%s1 + $0x8] sm:$0xff]
  %v59 = vld [vmem:[%s6] sm:$0x3f]
  %61 = vset.pattern.permute.xlu0 0
  %62 = vperm.xlu0 %61, %v55
  %v63 = vpop.permute.xlu0 %62
  %66 = vset.pattern.permute.xlu0 0
  %67 = vperm.xlu0 %66, %v56
  %v68 = vpop.permute.xlu0 %67
  %v70 = vlaneseq
  %v71 = vshrl.u32 %v70, 7
  %v72 = vsub.s32 0, %v71
  %v73 = vrot.slane %v59, %v72
  %v74 = vmul.f32 %v63, %v73
  %v75 = vmul.f32 %v68, %v73
  %76 = vset.pattern.permute.xlu0 1
  %77 = vperm.xlu0 %76, %v55
  %v78 = vpop.permute.xlu0 %77
  %80 = vset.pattern.permute.xlu0 1
  %81 = vperm.xlu0 %80, %v56
  %v82 = vpop.permute.xlu0 %81
  %v84 = vlaneseq
  %v85 = vshrl.u32 %v84, 7
  %v86 = vsub.s32 1, %v85
  %v87 = vrot.slane %v59, %v86
  %v88 = vmul.f32 %v78, %v87
  %v89 = vmul.f32 %v82, %v87
  %v90 = vadd.f32 %v74, %v88
  %v91 = vadd.f32 %v75, %v89
  %92 = vset.pattern.permute.xlu0 2
  %93 = vperm.xlu0 %92, %v55
  %v94 = vpop.permute.xlu0 %93
  %96 = vset.pattern.permute.xlu0 2
  %97 = vperm.xlu0 %96, %v56
  %v98 = vpop.permute.xlu0 %97
  %v100 = vlaneseq
  %v101 = vshrl.u32 %v100, 7
  %v102 = vsub.s32 2, %v101
  %v103 = vrot.slane %v59, %v102
  %v104 = vmul.f32 %v94, %v103
  %v105 = vmul.f32 %v98, %v103
  %v106 = vadd.f32 %v90, %v104
  %v107 = vadd.f32 %v91, %v105
  %109 = vset.pattern.permute.xlu0 0
  %110 = vperm.xlu0 %109, %v57
  %v111 = vpop.permute.xlu0 %110
  %114 = vset.pattern.permute.xlu0 0
  %115 = vperm.xlu0 %114, %v58
  %v116 = vpop.permute.xlu0 %115
  %v118 = vlaneseq
  %v119 = vshrl.u32 %v118, 7
  %v120 = vsub.s32 3, %v119
  %v121 = vrot.slane %v59, %v120
  %v122 = vmul.f32 %v111, %v121
  %v123 = vmul.f32 %v116, %v121
  %124 = vset.pattern.permute.xlu0 1
  %125 = vperm.xlu0 %124, %v57
  %v126 = vpop.permute.xlu0 %125
  %128 = vset.pattern.permute.xlu0 1
  %129 = vperm.xlu0 %128, %v58
  %v130 = vpop.permute.xlu0 %129
  %v132 = vlaneseq
  %v133 = vshrl.u32 %v132, 7
  %v134 = vsub.s32 4, %v133
  %v135 = vrot.slane %v59, %v134
  %v136 = vmul.f32 %v126, %v135
  %v137 = vmul.f32 %v130, %v135
  %v138 = vadd.f32 %v122, %v136
  %v139 = vadd.f32 %v123, %v137
  %140 = vset.pattern.permute.xlu0 2
  %141 = vperm.xlu0 %140, %v57
  %v142 = vpop.permute.xlu0 %141
  %144 = vset.pattern.permute.xlu0 2
  %145 = vperm.xlu0 %144, %v58
  %v146 = vpop.permute.xlu0 %145
  %v148 = vlaneseq
  %v149 = vshrl.u32 %v148, 7
  %v150 = vsub.s32 5, %v149
  %v151 = vrot.slane %v59, %v150
  %v152 = vmul.f32 %v142, %v151
  %v153 = vmul.f32 %v146, %v151
  %v154 = vadd.f32 %v138, %v152
  %v155 = vadd.f32 %v139, %v153
  %v156 = vld [vmem:[%s2] sm:$0xff]
  %v157 = vld [vmem:[%s2 + $0x8] sm:$0xff]
  %v158 = vld [vmem:[%s2 + $0x10] sm:$0xff]
  %v159 = vld [vmem:[%s2 + $0x18] sm:$0xff]
  %v160 = vld [vmem:[%s2 + $0x20] sm:$0xff]
  %v161 = vld [vmem:[%s2 + $0x28] sm:$0xff]
  %v162 = vld [vmem:[%s2 + $0x30] sm:$0xff]
  %v163 = vld [vmem:[%s3] sm:$0x1]
  %v164 = vlaneseq
  %v165 = vand.u32 %v164, 127
  %166 = vset.pattern.permute.xlu0 0
  %167 = vperm.xlu0 %166, %v156
  %v168 = vpop.permute.xlu0 %167
  %169 = vset.pattern.permute.xlu0 0
  %170 = vperm.xlu0 %169, %v157
  %v171 = vpop.permute.xlu0 %170
  %172 = vset.pattern.permute.xlu0 0
  %173 = vperm.xlu0 %172, %v158
  %v174 = vpop.permute.xlu0 %173
  %175 = vset.pattern.permute.xlu0 0
  %176 = vperm.xlu0 %175, %v159
  %v177 = vpop.permute.xlu0 %176
  %178 = vset.pattern.permute.xlu0 0
  %179 = vperm.xlu0 %178, %v160
  %v180 = vpop.permute.xlu0 %179
  %181 = vset.pattern.permute.xlu0 0
  %182 = vperm.xlu0 %181, %v161
  %v183 = vpop.permute.xlu0 %182
  %184 = vset.pattern.permute.xlu0 0
  %185 = vperm.xlu0 %184, %v162
  %v186 = vpop.permute.xlu0 %185
  %vm187 = vcmp.eq.s32.totalorder %v168, %v165
  %vm188 = vcmp.eq.s32.totalorder %v171, %v165
  %vm189 = vcmp.eq.s32.totalorder %v174, %v165
  %vm190 = vcmp.eq.s32.totalorder %v177, %v165
  %vm191 = vcmp.eq.s32.totalorder %v180, %v165
  %vm192 = vcmp.eq.s32.totalorder %v183, %v165
  %vm193 = vcmp.eq.s32.totalorder %v186, %v165
  %v194 = vsel %vm187, 1, 0
  %v195 = vsel %vm188, 1, 0
  %v196 = vsel %vm189, 1, 0
  %v197 = vsel %vm190, 1, 0
  %v198 = vsel %vm191, 1, 0
  %v199 = vsel %vm192, 1, 0
  %v200 = vsel %vm193, 1, 0
  %v201 = vcvt.s32.f32 %v194
  %v202 = vcvt.s32.f32 %v195
  %v203 = vcvt.s32.f32 %v196
  %v204 = vcvt.s32.f32 %v197
  %v205 = vcvt.s32.f32 %v198
  %v206 = vcvt.s32.f32 %v199
  %v207 = vcvt.s32.f32 %v200
  %v208 = vlaneseq
  %v209 = vshrl.u32 %v208, 7
  %v210 = vadd.s32 %v209, 8
  %v211 = vlaneseq
  %v212 = vshrl.u32 %v211, 7
  %v213 = vsub.s32 0, %v212
  %v214 = vrot.slane %v163, %v213
  %vm215 = vcmp.eq.s32.totalorder %v214, %v209
  %vm216 = vcmp.eq.s32.totalorder %v214, %v210
  %v217 = vsel %vm215, 1, 0
  %v218 = vsel %vm216, 1, 0
  %v219 = vcvt.s32.f32 %v217
  %v220 = vcvt.s32.f32 %v218
  %vm221 = vcmp.lt.s32.totalorder %v165, 24
  %v222 = vsel %vm221, 1, 0
  %v223 = vcvt.s32.f32 %v222
  %v224 = vmul.f32 %v219, %v223
  %v225 = vmul.f32 %v220, %v223
  %vm226 = vcmask 457728
  %v227 = vsel %vm226, %v224, 0.0
  %228 = vadd.xlane.f32.xlu0 %v227
  %v229 = vpop.xlane.xlu0 %228
  %v230 = vsel %vm226, %v225, 0.0
  %231 = vadd.xlane.f32.xlu0 %v230
  %v232 = vpop.xlane.xlu0 %231
  %v233 = vsub.f32 1.0, %v223
  %v234 = vmul.f32 %v219, %v233
  %v235 = vmul.f32 %v220, %v233
  %v236 = vsel %vm226, %v234, 0.0
  %237 = vadd.xlane.f32.xlu0 %v236
  %v238 = vpop.xlane.xlu0 %237
  %v239 = vsel %vm226, %v235, 0.0
  %240 = vadd.xlane.f32.xlu0 %v239
  %v241 = vpop.xlane.xlu0 %240
  %v242 = vmax.f32 %v229, 1.0
  %v243 = vmax.f32 %v232, 1.0
  %v244 = vrcp.pop %v242
  %v245 = vmul.f32 %v223, %v244
  %v246 = vrcp.pop %v243
  %v247 = vmul.f32 %v223, %v246
  %v248 = vmax.f32 %v238, 1.0
  %v249 = vmax.f32 %v241, 1.0
  %v250 = vrcp.pop %v248
  %v251 = vmul.f32 %v233, %v250
  %v252 = vrcp.pop %v249
  %v253 = vmul.f32 %v233, %v252
  %v254 = vadd.f32 %v245, %v251
  %v255 = vadd.f32 %v247, %v253
  %v256 = vmul.f32 %v219, %v254
  %v257 = vmul.f32 %v220, %v255
  %vm258 = vcmask 261120
  %v260 = vsel %vm258, %v201, 0
  %v263 = vsel %vm258, %v202, 0
  %v266 = vsel %vm258, %v203, 0
  %v269 = vsel %vm258, %v204, 0
  %v272 = vsel %vm258, %v205, 0
  %v275 = vsel %vm258, %v206, 0
  %v278 = vsel %vm258, %v207, 0
  %280 = vmatprep.subr.mxu0 0.0
  %281 = vmatpush1.msra.mxu0 0.0
  %282 = vmatprep.subr.mxu0 0.0
  %283 = vmatpush1.msra.mxu0 0.0
  %284 = vmatprep.subr.mxu0 0.0
  %285 = vmatpush1.msra.mxu0 0.0
  %286 = vmatprep.subr.mxu0 0.0
  %287 = vmatpush1.msra.mxu0 0.0
  %288 = vmatprep.subr.mxu0 0.0
  %289 = vmatpush1.msra.mxu0 0.0
  %290 = vmatprep.subr.mxu0 0.0
  %291 = vmatpush1.msra.mxu0 0.0
  %292 = vmatprep.subr.mxu0 0.0
  %293 = vmatpush1.msra.mxu0 0.0
  %294 = vmatprep.subr.mxu0 0.0
  %295 = vmatpush1.msra.mxu0 0.0
  %296 = vmatprep.subr.mxu0 0.0
  %297 = vmatpush1.msra.mxu0 0.0
  %298 = vmatprep.subr.mxu0 0.0
  %299 = vmatpush1.msra.mxu0 0.0
  %300 = vmatprep.subr.mxu0 0.0
  %301 = vmatpush1.msra.mxu0 0.0
  %302 = vmatprep.subr.mxu0 0.0
  %303 = vmatpush1.msra.mxu0 0.0
  %304 = vmatprep.subr.mxu0 0.0
  %305 = vmatpush1.msra.mxu0 %v155
  %306 = vmatprep.subr.mxu0 0.0
  %307 = vmatpush1.msra.mxu0 %v154
  %308 = vmatprep.subr.mxu0 0.0
  %309 = vmatpush1.msra.mxu0 %v107
  %310 = vmatprep.subr.mxu0 0.0
  %311 = vmatpush1.msra.mxu0 %v106
  %312 = vmatprep.subr.mxu0 0.0
  %313 = vmatpush2.msra.mxu0 0.0
  %314 = vmatprep.subr.mxu0 0.0
  %315 = vmatpush2.msra.mxu0 0.0
  %316 = vmatprep.subr.mxu0 0.0
  %317 = vmatpush2.msra.mxu0 0.0
  %318 = vmatprep.subr.mxu0 0.0
  %319 = vmatpush2.msra.mxu0 0.0
  %320 = vmatprep.subr.mxu0 0.0
  %321 = vmatpush2.msra.mxu0 0.0
  %322 = vmatprep.subr.mxu0 0.0
  %323 = vmatpush2.msra.mxu0 0.0
  %324 = vmatprep.subr.mxu0 0.0
  %325 = vmatpush2.msra.mxu0 0.0
  %326 = vmatprep.subr.mxu0 0.0
  %327 = vmatpush2.msra.mxu0 0.0
  %328 = vmatprep.subr.mxu0 0.0
  %329 = vmatpush2.msra.mxu0 0.0
  %330 = vmatprep.subr.mxu0 0.0
  %331 = vmatpush2.msra.mxu0 0.0
  %332 = vmatprep.subr.mxu0 0.0
  %333 = vmatpush2.msra.mxu0 0.0
  %334 = vmatprep.subr.mxu0 0.0
  %335 = vmatpush2.msra.mxu0 0.0
  %336 = vmatprep.subr.mxu0 0.0
  %337 = vmatpush2.msra.mxu0 0.0
  %338 = vmatprep.subr.mxu0 0.0
  %339 = vmatpush2.msra.mxu0 0.0
  %340 = vmatprep.subr.mxu0 0.0
  %341 = vmatpush2.msra.mxu0 0.0
  %342 = vmatprep.subr.mxu0 0.0
  %343 = vmatpush2.msra.mxu0 0.0
  %344 = vmatprep.mubr.f32.mxu0 0.0
  %345 = vmatmul.mubr.f32.gmra.mxu0 %v260
  %v346 = vpop.f32.mrf.mxu0
  %v347 = vadd.f32 0.0, %v346
  %v348 = vpop.f32.mrf.mxu0
  %349 = vmatprep.mubr.f32.mxu0 0.0
  %350 = vmatmul.mubr.f32.gmra.mxu0 %v263
  %v351 = vpop.f32.mrf.mxu0
  %v352 = vadd.f32 0.0, %v351
  %v353 = vpop.f32.mrf.mxu0
  %354 = vmatprep.mubr.f32.mxu0 0.0
  %355 = vmatmul.mubr.f32.gmra.mxu0 %v266
  %v356 = vpop.f32.mrf.mxu0
  %v357 = vadd.f32 0.0, %v356
  %v358 = vpop.f32.mrf.mxu0
  %359 = vmatprep.mubr.f32.mxu0 0.0
  %360 = vmatmul.mubr.f32.gmra.mxu0 %v269
  %v361 = vpop.f32.mrf.mxu0
  %v362 = vadd.f32 0.0, %v361
  %v363 = vpop.f32.mrf.mxu0
  %364 = vmatprep.mubr.f32.mxu0 0.0
  %365 = vmatmul.mubr.f32.gmra.mxu0 %v272
  %v366 = vpop.f32.mrf.mxu0
  %v367 = vadd.f32 0.0, %v366
  %v368 = vpop.f32.mrf.mxu0
  %369 = vmatprep.mubr.f32.mxu0 0.0
  %370 = vmatmul.mubr.f32.gmra.mxu0 %v275
  %v371 = vpop.f32.mrf.mxu0
  %v372 = vadd.f32 0.0, %v371
  %v373 = vpop.f32.mrf.mxu0
  %374 = vmatprep.mubr.f32.mxu0 0.0
  %375 = vmatmul.mubr.f32.gmra.mxu0 %v278
  %v376 = vpop.f32.mrf.mxu0
  %v377 = vadd.f32 0.0, %v376
  %v378 = vpop.f32.mrf.mxu0
  %379 = vdwg.mxu0
  %v380 = vld [vmem:[%s7] sm:$0x7]
  %v381 = vlaneseq
  %v382 = vshrl.u32 %v381, 7
  %v383 = vsub.s32 0, %v382
  %v384 = vrot.slane %v380, %v383
  %v385 = vmul.f32 %v63, %v384
  %v386 = vmul.f32 %v68, %v384
  %v387 = vlaneseq
  %v388 = vshrl.u32 %v387, 7
  %v389 = vsub.s32 1, %v388
  %v390 = vrot.slane %v380, %v389
  %v391 = vmul.f32 %v78, %v390
  %v392 = vmul.f32 %v82, %v390
  %v393 = vadd.f32 %v385, %v391
  %v394 = vadd.f32 %v386, %v392
  %v395 = vlaneseq
  %v396 = vshrl.u32 %v395, 7
  %v397 = vsub.s32 2, %v396
  %v398 = vrot.slane %v380, %v397
  %v399 = vmul.f32 %v94, %v398
  %v400 = vmul.f32 %v98, %v398
  %v401 = vadd.f32 %v393, %v399
  %v402 = vadd.f32 %v394, %v400
  %v404 = vsel %vm226, %v256, 0
  %v407 = vsel %vm226, %v257, 0
  %409 = vmatprep.subr.mxu0 0.0
  %410 = vmatpush1.msra.mxu0 0.0
  %411 = vmatprep.subr.mxu0 0.0
  %412 = vmatpush1.msra.mxu0 0.0
  %413 = vmatprep.subr.mxu0 0.0
  %414 = vmatpush1.msra.mxu0 0.0
  %415 = vmatprep.subr.mxu0 0.0
  %416 = vmatpush1.msra.mxu0 0.0
  %417 = vmatprep.subr.mxu0 0.0
  %418 = vmatpush1.msra.mxu0 0.0
  %419 = vmatprep.subr.mxu0 0.0
  %420 = vmatpush1.msra.mxu0 0.0
  %421 = vmatprep.subr.mxu0 0.0
  %422 = vmatpush1.msra.mxu0 0.0
  %423 = vmatprep.subr.mxu0 0.0
  %424 = vmatpush1.msra.mxu0 0.0
  %425 = vmatprep.subr.mxu0 0.0
  %426 = vmatpush1.msra.mxu0 0.0
  %427 = vmatprep.subr.mxu0 0.0
  %428 = vmatpush1.msra.mxu0 %v377
  %429 = vmatprep.subr.mxu0 0.0
  %430 = vmatpush1.msra.mxu0 %v372
  %431 = vmatprep.subr.mxu0 0.0
  %432 = vmatpush1.msra.mxu0 %v367
  %433 = vmatprep.subr.mxu0 0.0
  %434 = vmatpush1.msra.mxu0 %v362
  %435 = vmatprep.subr.mxu0 0.0
  %436 = vmatpush1.msra.mxu0 %v357
  %437 = vmatprep.subr.mxu0 0.0
  %438 = vmatpush1.msra.mxu0 %v352
  %439 = vmatprep.subr.mxu0 0.0
  %440 = vmatpush1.msra.mxu0 %v347
  %441 = vmatprep.subr.mxu0 0.0
  %442 = vmatpush2.msra.mxu0 0.0
  %443 = vmatprep.subr.mxu0 0.0
  %444 = vmatpush2.msra.mxu0 0.0
  %445 = vmatprep.subr.mxu0 0.0
  %446 = vmatpush2.msra.mxu0 0.0
  %447 = vmatprep.subr.mxu0 0.0
  %448 = vmatpush2.msra.mxu0 0.0
  %449 = vmatprep.subr.mxu0 0.0
  %450 = vmatpush2.msra.mxu0 0.0
  %451 = vmatprep.subr.mxu0 0.0
  %452 = vmatpush2.msra.mxu0 0.0
  %453 = vmatprep.subr.mxu0 0.0
  %454 = vmatpush2.msra.mxu0 0.0
  %455 = vmatprep.subr.mxu0 0.0
  %456 = vmatpush2.msra.mxu0 0.0
  %457 = vmatprep.subr.mxu0 0.0
  %458 = vmatpush2.msra.mxu0 0.0
  %459 = vmatprep.subr.mxu0 0.0
  %460 = vmatpush2.msra.mxu0 0.0
  %461 = vmatprep.subr.mxu0 0.0
  %462 = vmatpush2.msra.mxu0 0.0
  %463 = vmatprep.subr.mxu0 0.0
  %464 = vmatpush2.msra.mxu0 0.0
  %465 = vmatprep.subr.mxu0 0.0
  %466 = vmatpush2.msra.mxu0 0.0
  %467 = vmatprep.subr.mxu0 0.0
  %468 = vmatpush2.msra.mxu0 0.0
  %469 = vmatprep.subr.mxu0 0.0
  %470 = vmatpush2.msra.mxu0 0.0
  %471 = vmatprep.subr.mxu0 0.0
  %472 = vmatpush2.msra.mxu0 0.0
  %473 = vmatprep.mubr.f32.mxu0 0.0
  %474 = vmatmul.mubr.f32.gmra.mxu0 %v404
  %v475 = vpop.f32.mrf.mxu0
  %v476 = vadd.f32 %v401, %v475
  %v477 = vpop.f32.mrf.mxu0
  %478 = vmatprep.mubr.f32.mxu0 0.0
  %479 = vmatmul.mubr.f32.gmra.mxu0 %v407
  %v480 = vpop.f32.mrf.mxu0
  %v481 = vadd.f32 %v402, %v480
  %v482 = vpop.f32.mrf.mxu0
  %483 = vdwg.mxu0
  %v484 = vld [vmem:[%s8] sm:$0x1]
  %v486 = vlaneseq
  %v487 = vshrl.u32 %v486, 7
  %v488 = vsub.s32 0, %v487
  %v489 = vrot.slane %v484, %v488
  %v491 = vadd.f32 %v476, %v489
  %v492 = vadd.f32 %v481, %v489
  %v493 = vmax.f32 %v491, 0.0
  %v494 = vmax.f32 %v492, 0.0
  %v495 = vld [vmem:[%s12] sm:$0xff]
  %v496 = vld [vmem:[%s12 + $0x8] sm:$0xff]
  %v497 = vld [vmem:[%s12 + $0x10] sm:$0xff]
  %v498 = vld [vmem:[%s12 + $0x18] sm:$0xff]
  %v499 = vld [vmem:[%s12 + $0x20] sm:$0xff]
  %v500 = vld [vmem:[%s12 + $0x28] sm:$0xff]
  %v501 = vld [vmem:[%s12 + $0x30] sm:$0xff]
  %v502 = vld [vmem:[%s12 + $0x38] sm:$0xff]
  %v503 = vld [vmem:[%s13] sm:$0x1]
  %v505 = vlaneseq
  %v506 = vshrl.u32 %v505, 7
  %v507 = vsub.s32 0, %v506
  %v508 = vrot.slane %v503, %v507
  %vm510 = vcmask 523264
  %v512 = vsel %vm510, %v493, 0
  %v515 = vsel %vm510, %v494, 0
  %517 = vmatprep.subr.mxu0 0.0
  %518 = vmatpush1.msra.mxu0 0.0
  %519 = vmatprep.subr.mxu0 0.0
  %520 = vmatpush1.msra.mxu0 0.0
  %521 = vmatprep.subr.mxu0 0.0
  %522 = vmatpush1.msra.mxu0 0.0
  %523 = vmatprep.subr.mxu0 0.0
  %524 = vmatpush1.msra.mxu0 0.0
  %525 = vmatprep.subr.mxu0 0.0
  %526 = vmatpush1.msra.mxu0 0.0
  %527 = vmatprep.subr.mxu0 0.0
  %528 = vmatpush1.msra.mxu0 0.0
  %529 = vmatprep.subr.mxu0 0.0
  %530 = vmatpush1.msra.mxu0 0.0
  %531 = vmatprep.subr.mxu0 0.0
  %532 = vmatpush1.msra.mxu0 0.0
  %533 = vmatprep.subr.mxu0 0.0
  %534 = vmatpush1.msra.mxu0 %v502
  %535 = vmatprep.subr.mxu0 0.0
  %536 = vmatpush1.msra.mxu0 %v501
  %537 = vmatprep.subr.mxu0 0.0
  %538 = vmatpush1.msra.mxu0 %v500
  %539 = vmatprep.subr.mxu0 0.0
  %540 = vmatpush1.msra.mxu0 %v499
  %541 = vmatprep.subr.mxu0 0.0
  %542 = vmatpush1.msra.mxu0 %v498
  %543 = vmatprep.subr.mxu0 0.0
  %544 = vmatpush1.msra.mxu0 %v497
  %545 = vmatprep.subr.mxu0 0.0
  %546 = vmatpush1.msra.mxu0 %v496
  %547 = vmatprep.subr.mxu0 0.0
  %548 = vmatpush1.msra.mxu0 %v495
  %549 = vmatprep.subr.mxu0 0.0
  %550 = vmatpush2.msra.mxu0 0.0
  %551 = vmatprep.subr.mxu0 0.0
  %552 = vmatpush2.msra.mxu0 0.0
  %553 = vmatprep.subr.mxu0 0.0
  %554 = vmatpush2.msra.mxu0 0.0
  %555 = vmatprep.subr.mxu0 0.0
  %556 = vmatpush2.msra.mxu0 0.0
  %557 = vmatprep.subr.mxu0 0.0
  %558 = vmatpush2.msra.mxu0 0.0
  %559 = vmatprep.subr.mxu0 0.0
  %560 = vmatpush2.msra.mxu0 0.0
  %561 = vmatprep.subr.mxu0 0.0
  %562 = vmatpush2.msra.mxu0 0.0
  %563 = vmatprep.subr.mxu0 0.0
  %564 = vmatpush2.msra.mxu0 0.0
  %565 = vmatprep.subr.mxu0 0.0
  %566 = vmatpush2.msra.mxu0 0.0
  %567 = vmatprep.subr.mxu0 0.0
  %568 = vmatpush2.msra.mxu0 0.0
  %569 = vmatprep.subr.mxu0 0.0
  %570 = vmatpush2.msra.mxu0 0.0
  %571 = vmatprep.subr.mxu0 0.0
  %572 = vmatpush2.msra.mxu0 0.0
  %573 = vmatprep.subr.mxu0 0.0
  %574 = vmatpush2.msra.mxu0 0.0
  %575 = vmatprep.subr.mxu0 0.0
  %576 = vmatpush2.msra.mxu0 0.0
  %577 = vmatprep.subr.mxu0 0.0
  %578 = vmatpush2.msra.mxu0 0.0
  %579 = vmatprep.subr.mxu0 0.0
  %580 = vmatpush2.msra.mxu0 0.0
  %581 = vmatprep.mubr.f32.mxu0 0.0
  %582 = vmatmul.mubr.f32.gmra.mxu0 %v512
  %v583 = vpop.f32.mrf.mxu0
  %v584 = vadd.f32 %v508, %v583
  %v585 = vpop.f32.mrf.mxu0
  %586 = vmatprep.mubr.f32.mxu0 0.0
  %587 = vmatmul.mubr.f32.gmra.mxu0 %v515
  %v588 = vpop.f32.mrf.mxu0
  %v589 = vadd.f32 %v508, %v588
  %v590 = vpop.f32.mrf.mxu0
  %591 = vdwg.mxu0
  %592 = vst [vmem:[%s16] sm:$0xff] %v584
  %593 = vst [vmem:[%s16 + $0x8] sm:$0xff] %v589
  %v594 = vld [vmem:[%s9] sm:$0x3f]
  %v595 = vlaneseq
  %v596 = vshrl.u32 %v595, 7
  %v597 = vsub.s32 0, %v596
  %v598 = vrot.slane %v594, %v597
  %v599 = vmul.f32 %v111, %v598
  %v600 = vmul.f32 %v116, %v598
  %v601 = vlaneseq
  %v602 = vshrl.u32 %v601, 7
  %v603 = vsub.s32 1, %v602
  %v604 = vrot.slane %v594, %v603
  %v605 = vmul.f32 %v126, %v604
  %v606 = vmul.f32 %v130, %v604
  %v607 = vadd.f32 %v599, %v605
  %v608 = vadd.f32 %v600, %v606
  %v609 = vlaneseq
  %v610 = vshrl.u32 %v609, 7
  %v611 = vsub.s32 2, %v610
  %v612 = vrot.slane %v594, %v611
  %v613 = vmul.f32 %v142, %v612
  %v614 = vmul.f32 %v146, %v612
  %v615 = vadd.f32 %v607, %v613
  %v616 = vadd.f32 %v608, %v614
  %v617 = vlaneseq
  %v618 = vshrl.u32 %v617, 7
  %v619 = vsub.s32 3, %v618
  %v620 = vrot.slane %v594, %v619
  %v621 = vmul.f32 %v63, %v620
  %v622 = vmul.f32 %v68, %v620
  %v623 = vlaneseq
  %v624 = vshrl.u32 %v623, 7
  %v625 = vsub.s32 4, %v624
  %v626 = vrot.slane %v594, %v625
  %v627 = vmul.f32 %v78, %v626
  %v628 = vmul.f32 %v82, %v626
  %v629 = vadd.f32 %v621, %v627
  %v630 = vadd.f32 %v622, %v628
  %v631 = vlaneseq
  %v632 = vshrl.u32 %v631, 7
  %v633 = vsub.s32 5, %v632
  %v634 = vrot.slane %v594, %v633
  %v635 = vmul.f32 %v94, %v634
  %v636 = vmul.f32 %v98, %v634
  %v637 = vadd.f32 %v629, %v635
  %v638 = vadd.f32 %v630, %v636
  %v639 = vld [vmem:[%s4] sm:$0xff]
  %v640 = vld [vmem:[%s4 + $0x8] sm:$0xff]
  %v641 = vld [vmem:[%s4 + $0x10] sm:$0xff]
  %v642 = vld [vmem:[%s4 + $0x18] sm:$0xff]
  %v643 = vld [vmem:[%s4 + $0x20] sm:$0xff]
  %v644 = vld [vmem:[%s4 + $0x28] sm:$0xff]
  %v645 = vld [vmem:[%s4 + $0x30] sm:$0xff]
  %v646 = vld [vmem:[%s5] sm:$0x1]
  %647 = vset.pattern.permute.xlu0 0
  %648 = vperm.xlu0 %647, %v639
  %v649 = vpop.permute.xlu0 %648
  %650 = vset.pattern.permute.xlu0 0
  %651 = vperm.xlu0 %650, %v640
  %v652 = vpop.permute.xlu0 %651
  %653 = vset.pattern.permute.xlu0 0
  %654 = vperm.xlu0 %653, %v641
  %v655 = vpop.permute.xlu0 %654
  %656 = vset.pattern.permute.xlu0 0
  %657 = vperm.xlu0 %656, %v642
  %v658 = vpop.permute.xlu0 %657
  %659 = vset.pattern.permute.xlu0 0
  %660 = vperm.xlu0 %659, %v643
  %v661 = vpop.permute.xlu0 %660
  %662 = vset.pattern.permute.xlu0 0
  %663 = vperm.xlu0 %662, %v644
  %v664 = vpop.permute.xlu0 %663
  %665 = vset.pattern.permute.xlu0 0
  %666 = vperm.xlu0 %665, %v645
  %v667 = vpop.permute.xlu0 %666
  %vm668 = vcmp.eq.s32.totalorder %v649, %v165
  %vm669 = vcmp.eq.s32.totalorder %v652, %v165
  %vm670 = vcmp.eq.s32.totalorder %v655, %v165
  %vm671 = vcmp.eq.s32.totalorder %v658, %v165
  %vm672 = vcmp.eq.s32.totalorder %v661, %v165
  %vm673 = vcmp.eq.s32.totalorder %v664, %v165
  %vm674 = vcmp.eq.s32.totalorder %v667, %v165
  %v675 = vsel %vm668, 1, 0
  %v676 = vsel %vm669, 1, 0
  %v677 = vsel %vm670, 1, 0
  %v678 = vsel %vm671, 1, 0
  %v679 = vsel %vm672, 1, 0
  %v680 = vsel %vm673, 1, 0
  %v681 = vsel %vm674, 1, 0
  %v682 = vcvt.s32.f32 %v675
  %v683 = vcvt.s32.f32 %v676
  %v684 = vcvt.s32.f32 %v677
  %v685 = vcvt.s32.f32 %v678
  %v686 = vcvt.s32.f32 %v679
  %v687 = vcvt.s32.f32 %v680
  %v688 = vcvt.s32.f32 %v681
  %v689 = vlaneseq
  %v690 = vshrl.u32 %v689, 7
  %v691 = vsub.s32 0, %v690
  %v692 = vrot.slane %v646, %v691
  %vm693 = vcmp.eq.s32.totalorder %v692, %v209
  %vm694 = vcmp.eq.s32.totalorder %v692, %v210
  %v695 = vsel %vm693, 1, 0
  %v696 = vsel %vm694, 1, 0
  %v697 = vcvt.s32.f32 %v695
  %v698 = vcvt.s32.f32 %v696
  %v699 = vmul.f32 %v697, %v223
  %v700 = vmul.f32 %v698, %v223
  %v701 = vsel %vm226, %v699, 0.0
  %702 = vadd.xlane.f32.xlu0 %v701
  %v703 = vpop.xlane.xlu0 %702
  %v704 = vsel %vm226, %v700, 0.0
  %705 = vadd.xlane.f32.xlu0 %v704
  %v706 = vpop.xlane.xlu0 %705
  %v707 = vmul.f32 %v697, %v233
  %v708 = vmul.f32 %v698, %v233
  %v709 = vsel %vm226, %v707, 0.0
  %710 = vadd.xlane.f32.xlu0 %v709
  %v711 = vpop.xlane.xlu0 %710
  %v712 = vsel %vm226, %v708, 0.0
  %713 = vadd.xlane.f32.xlu0 %v712
  %v714 = vpop.xlane.xlu0 %713
  %v715 = vmax.f32 %v703, 1.0
  %v716 = vmax.f32 %v706, 1.0
  %v717 = vrcp.pop %v715
  %v718 = vmul.f32 %v223, %v717
  %v719 = vrcp.pop %v716
  %v720 = vmul.f32 %v223, %v719
  %v721 = vmax.f32 %v711, 1.0
  %v722 = vmax.f32 %v714, 1.0
  %v723 = vrcp.pop %v721
  %v724 = vmul.f32 %v233, %v723
  %v725 = vrcp.pop %v722
  %v726 = vmul.f32 %v233, %v725
  %v727 = vadd.f32 %v718, %v724
  %v728 = vadd.f32 %v720, %v726
  %v729 = vmul.f32 %v697, %v727
  %v730 = vmul.f32 %v698, %v728
  %v732 = vsel %vm258, %v682, 0
  %v735 = vsel %vm258, %v683, 0
  %v738 = vsel %vm258, %v684, 0
  %v741 = vsel %vm258, %v685, 0
  %v744 = vsel %vm258, %v686, 0
  %v747 = vsel %vm258, %v687, 0
  %v750 = vsel %vm258, %v688, 0
  %752 = vmatprep.subr.mxu0 0.0
  %753 = vmatpush1.msra.mxu0 0.0
  %754 = vmatprep.subr.mxu0 0.0
  %755 = vmatpush1.msra.mxu0 0.0
  %756 = vmatprep.subr.mxu0 0.0
  %757 = vmatpush1.msra.mxu0 0.0
  %758 = vmatprep.subr.mxu0 0.0
  %759 = vmatpush1.msra.mxu0 0.0
  %760 = vmatprep.subr.mxu0 0.0
  %761 = vmatpush1.msra.mxu0 0.0
  %762 = vmatprep.subr.mxu0 0.0
  %763 = vmatpush1.msra.mxu0 0.0
  %764 = vmatprep.subr.mxu0 0.0
  %765 = vmatpush1.msra.mxu0 0.0
  %766 = vmatprep.subr.mxu0 0.0
  %767 = vmatpush1.msra.mxu0 0.0
  %768 = vmatprep.subr.mxu0 0.0
  %769 = vmatpush1.msra.mxu0 0.0
  %770 = vmatprep.subr.mxu0 0.0
  %771 = vmatpush1.msra.mxu0 0.0
  %772 = vmatprep.subr.mxu0 0.0
  %773 = vmatpush1.msra.mxu0 0.0
  %774 = vmatprep.subr.mxu0 0.0
  %775 = vmatpush1.msra.mxu0 0.0
  %776 = vmatprep.subr.mxu0 0.0
  %777 = vmatpush1.msra.mxu0 %v638
  %778 = vmatprep.subr.mxu0 0.0
  %779 = vmatpush1.msra.mxu0 %v637
  %780 = vmatprep.subr.mxu0 0.0
  %781 = vmatpush1.msra.mxu0 %v616
  %782 = vmatprep.subr.mxu0 0.0
  %783 = vmatpush1.msra.mxu0 %v615
  %784 = vmatprep.subr.mxu0 0.0
  %785 = vmatpush2.msra.mxu0 0.0
  %786 = vmatprep.subr.mxu0 0.0
  %787 = vmatpush2.msra.mxu0 0.0
  %788 = vmatprep.subr.mxu0 0.0
  %789 = vmatpush2.msra.mxu0 0.0
  %790 = vmatprep.subr.mxu0 0.0
  %791 = vmatpush2.msra.mxu0 0.0
  %792 = vmatprep.subr.mxu0 0.0
  %793 = vmatpush2.msra.mxu0 0.0
  %794 = vmatprep.subr.mxu0 0.0
  %795 = vmatpush2.msra.mxu0 0.0
  %796 = vmatprep.subr.mxu0 0.0
  %797 = vmatpush2.msra.mxu0 0.0
  %798 = vmatprep.subr.mxu0 0.0
  %799 = vmatpush2.msra.mxu0 0.0
  %800 = vmatprep.subr.mxu0 0.0
  %801 = vmatpush2.msra.mxu0 0.0
  %802 = vmatprep.subr.mxu0 0.0
  %803 = vmatpush2.msra.mxu0 0.0
  %804 = vmatprep.subr.mxu0 0.0
  %805 = vmatpush2.msra.mxu0 0.0
  %806 = vmatprep.subr.mxu0 0.0
  %807 = vmatpush2.msra.mxu0 0.0
  %808 = vmatprep.subr.mxu0 0.0
  %809 = vmatpush2.msra.mxu0 0.0
  %810 = vmatprep.subr.mxu0 0.0
  %811 = vmatpush2.msra.mxu0 0.0
  %812 = vmatprep.subr.mxu0 0.0
  %813 = vmatpush2.msra.mxu0 0.0
  %814 = vmatprep.subr.mxu0 0.0
  %815 = vmatpush2.msra.mxu0 0.0
  %816 = vmatprep.mubr.f32.mxu0 0.0
  %817 = vmatmul.mubr.f32.gmra.mxu0 %v732
  %v818 = vpop.f32.mrf.mxu0
  %v819 = vadd.f32 0.0, %v818
  %v820 = vpop.f32.mrf.mxu0
  %821 = vmatprep.mubr.f32.mxu0 0.0
  %822 = vmatmul.mubr.f32.gmra.mxu0 %v735
  %v823 = vpop.f32.mrf.mxu0
  %v824 = vadd.f32 0.0, %v823
  %v825 = vpop.f32.mrf.mxu0
  %826 = vmatprep.mubr.f32.mxu0 0.0
  %827 = vmatmul.mubr.f32.gmra.mxu0 %v738
  %v828 = vpop.f32.mrf.mxu0
  %v829 = vadd.f32 0.0, %v828
  %v830 = vpop.f32.mrf.mxu0
  %831 = vmatprep.mubr.f32.mxu0 0.0
  %832 = vmatmul.mubr.f32.gmra.mxu0 %v741
  %v833 = vpop.f32.mrf.mxu0
  %v834 = vadd.f32 0.0, %v833
  %v835 = vpop.f32.mrf.mxu0
  %836 = vmatprep.mubr.f32.mxu0 0.0
  %837 = vmatmul.mubr.f32.gmra.mxu0 %v744
  %v838 = vpop.f32.mrf.mxu0
  %v839 = vadd.f32 0.0, %v838
  %v840 = vpop.f32.mrf.mxu0
  %841 = vmatprep.mubr.f32.mxu0 0.0
  %842 = vmatmul.mubr.f32.gmra.mxu0 %v747
  %v843 = vpop.f32.mrf.mxu0
  %v844 = vadd.f32 0.0, %v843
  %v845 = vpop.f32.mrf.mxu0
  %846 = vmatprep.mubr.f32.mxu0 0.0
  %847 = vmatmul.mubr.f32.gmra.mxu0 %v750
  %v848 = vpop.f32.mrf.mxu0
  %v849 = vadd.f32 0.0, %v848
  %v850 = vpop.f32.mrf.mxu0
  %851 = vdwg.mxu0
  %v852 = vld [vmem:[%s10] sm:$0x7]
  %v853 = vlaneseq
  %v854 = vshrl.u32 %v853, 7
  %v855 = vsub.s32 0, %v854
  %v856 = vrot.slane %v852, %v855
  %v857 = vmul.f32 %v111, %v856
  %v858 = vmul.f32 %v116, %v856
  %v859 = vlaneseq
  %v860 = vshrl.u32 %v859, 7
  %v861 = vsub.s32 1, %v860
  %v862 = vrot.slane %v852, %v861
  %v863 = vmul.f32 %v126, %v862
  %v864 = vmul.f32 %v130, %v862
  %v865 = vadd.f32 %v857, %v863
  %v866 = vadd.f32 %v858, %v864
  %v867 = vlaneseq
  %v868 = vshrl.u32 %v867, 7
  %v869 = vsub.s32 2, %v868
  %v870 = vrot.slane %v852, %v869
  %v871 = vmul.f32 %v142, %v870
  %v872 = vmul.f32 %v146, %v870
  %v873 = vadd.f32 %v865, %v871
  %v874 = vadd.f32 %v866, %v872
  %v876 = vsel %vm226, %v729, 0
  %v879 = vsel %vm226, %v730, 0
  %881 = vmatprep.subr.mxu0 0.0
  %882 = vmatpush1.msra.mxu0 0.0
  %883 = vmatprep.subr.mxu0 0.0
  %884 = vmatpush1.msra.mxu0 0.0
  %885 = vmatprep.subr.mxu0 0.0
  %886 = vmatpush1.msra.mxu0 0.0
  %887 = vmatprep.subr.mxu0 0.0
  %888 = vmatpush1.msra.mxu0 0.0
  %889 = vmatprep.subr.mxu0 0.0
  %890 = vmatpush1.msra.mxu0 0.0
  %891 = vmatprep.subr.mxu0 0.0
  %892 = vmatpush1.msra.mxu0 0.0
  %893 = vmatprep.subr.mxu0 0.0
  %894 = vmatpush1.msra.mxu0 0.0
  %895 = vmatprep.subr.mxu0 0.0
  %896 = vmatpush1.msra.mxu0 0.0
  %897 = vmatprep.subr.mxu0 0.0
  %898 = vmatpush1.msra.mxu0 0.0
  %899 = vmatprep.subr.mxu0 0.0
  %900 = vmatpush1.msra.mxu0 %v849
  %901 = vmatprep.subr.mxu0 0.0
  %902 = vmatpush1.msra.mxu0 %v844
  %903 = vmatprep.subr.mxu0 0.0
  %904 = vmatpush1.msra.mxu0 %v839
  %905 = vmatprep.subr.mxu0 0.0
  %906 = vmatpush1.msra.mxu0 %v834
  %907 = vmatprep.subr.mxu0 0.0
  %908 = vmatpush1.msra.mxu0 %v829
  %909 = vmatprep.subr.mxu0 0.0
  %910 = vmatpush1.msra.mxu0 %v824
  %911 = vmatprep.subr.mxu0 0.0
  %912 = vmatpush1.msra.mxu0 %v819
  %913 = vmatprep.subr.mxu0 0.0
  %914 = vmatpush2.msra.mxu0 0.0
  %915 = vmatprep.subr.mxu0 0.0
  %916 = vmatpush2.msra.mxu0 0.0
  %917 = vmatprep.subr.mxu0 0.0
  %918 = vmatpush2.msra.mxu0 0.0
  %919 = vmatprep.subr.mxu0 0.0
  %920 = vmatpush2.msra.mxu0 0.0
  %921 = vmatprep.subr.mxu0 0.0
  %922 = vmatpush2.msra.mxu0 0.0
  %923 = vmatprep.subr.mxu0 0.0
  %924 = vmatpush2.msra.mxu0 0.0
  %925 = vmatprep.subr.mxu0 0.0
  %926 = vmatpush2.msra.mxu0 0.0
  %927 = vmatprep.subr.mxu0 0.0
  %928 = vmatpush2.msra.mxu0 0.0
  %929 = vmatprep.subr.mxu0 0.0
  %930 = vmatpush2.msra.mxu0 0.0
  %931 = vmatprep.subr.mxu0 0.0
  %932 = vmatpush2.msra.mxu0 0.0
  %933 = vmatprep.subr.mxu0 0.0
  %934 = vmatpush2.msra.mxu0 0.0
  %935 = vmatprep.subr.mxu0 0.0
  %936 = vmatpush2.msra.mxu0 0.0
  %937 = vmatprep.subr.mxu0 0.0
  %938 = vmatpush2.msra.mxu0 0.0
  %939 = vmatprep.subr.mxu0 0.0
  %940 = vmatpush2.msra.mxu0 0.0
  %941 = vmatprep.subr.mxu0 0.0
  %942 = vmatpush2.msra.mxu0 0.0
  %943 = vmatprep.subr.mxu0 0.0
  %944 = vmatpush2.msra.mxu0 0.0
  %945 = vmatprep.mubr.f32.mxu0 0.0
  %946 = vmatmul.mubr.f32.gmra.mxu0 %v876
  %v947 = vpop.f32.mrf.mxu0
  %v948 = vadd.f32 %v873, %v947
  %v949 = vpop.f32.mrf.mxu0
  %950 = vmatprep.mubr.f32.mxu0 0.0
  %951 = vmatmul.mubr.f32.gmra.mxu0 %v879
  %v952 = vpop.f32.mrf.mxu0
  %v953 = vadd.f32 %v874, %v952
  %v954 = vpop.f32.mrf.mxu0
  %955 = vdwg.mxu0
  %v956 = vld [vmem:[%s11] sm:$0x1]
  %v958 = vlaneseq
  %v959 = vshrl.u32 %v958, 7
  %v960 = vsub.s32 0, %v959
  %v961 = vrot.slane %v956, %v960
  %v963 = vadd.f32 %v948, %v961
  %v964 = vadd.f32 %v953, %v961
  %v965 = vmax.f32 %v963, 0.0
  %v966 = vmax.f32 %v964, 0.0
  %v967 = vld [vmem:[%s14] sm:$0xff]
  %v968 = vld [vmem:[%s14 + $0x8] sm:$0xff]
  %v969 = vld [vmem:[%s14 + $0x10] sm:$0xff]
  %v970 = vld [vmem:[%s14 + $0x18] sm:$0xff]
  %v971 = vld [vmem:[%s14 + $0x20] sm:$0xff]
  %v972 = vld [vmem:[%s14 + $0x28] sm:$0xff]
  %v973 = vld [vmem:[%s14 + $0x30] sm:$0xff]
  %v974 = vld [vmem:[%s14 + $0x38] sm:$0xff]
  %v975 = vld [vmem:[%s15] sm:$0x1]
  %v977 = vlaneseq
  %v978 = vshrl.u32 %v977, 7
  %v979 = vsub.s32 0, %v978
  %v980 = vrot.slane %v975, %v979
  %v983 = vsel %vm510, %v965, 0
  %v986 = vsel %vm510, %v966, 0
  %988 = vmatprep.subr.mxu0 0.0
  %989 = vmatpush1.msra.mxu0 0.0
  %990 = vmatprep.subr.mxu0 0.0
  %991 = vmatpush1.msra.mxu0 0.0
  %992 = vmatprep.subr.mxu0 0.0
  %993 = vmatpush1.msra.mxu0 0.0
  %994 = vmatprep.subr.mxu0 0.0
  %995 = vmatpush1.msra.mxu0 0.0
  %996 = vmatprep.subr.mxu0 0.0
  %997 = vmatpush1.msra.mxu0 0.0
  %998 = vmatprep.subr.mxu0 0.0
  %999 = vmatpush1.msra.mxu0 0.0
  %1000 = vmatprep.subr.mxu0 0.0
  %1001 = vmatpush1.msra.mxu0 0.0
  %1002 = vmatprep.subr.mxu0 0.0
  %1003 = vmatpush1.msra.mxu0 0.0
  %1004 = vmatprep.subr.mxu0 0.0
  %1005 = vmatpush1.msra.mxu0 %v974
  %1006 = vmatprep.subr.mxu0 0.0
  %1007 = vmatpush1.msra.mxu0 %v973
  %1008 = vmatprep.subr.mxu0 0.0
  %1009 = vmatpush1.msra.mxu0 %v972
  %1010 = vmatprep.subr.mxu0 0.0
  %1011 = vmatpush1.msra.mxu0 %v971
  %1012 = vmatprep.subr.mxu0 0.0
  %1013 = vmatpush1.msra.mxu0 %v970
  %1014 = vmatprep.subr.mxu0 0.0
  %1015 = vmatpush1.msra.mxu0 %v969
  %1016 = vmatprep.subr.mxu0 0.0
  %1017 = vmatpush1.msra.mxu0 %v968
  %1018 = vmatprep.subr.mxu0 0.0
  %1019 = vmatpush1.msra.mxu0 %v967
  %1020 = vmatprep.subr.mxu0 0.0
  %1021 = vmatpush2.msra.mxu0 0.0
  %1022 = vmatprep.subr.mxu0 0.0
  %1023 = vmatpush2.msra.mxu0 0.0
  %1024 = vmatprep.subr.mxu0 0.0
  %1025 = vmatpush2.msra.mxu0 0.0
  %1026 = vmatprep.subr.mxu0 0.0
  %1027 = vmatpush2.msra.mxu0 0.0
  %1028 = vmatprep.subr.mxu0 0.0
  %1029 = vmatpush2.msra.mxu0 0.0
  %1030 = vmatprep.subr.mxu0 0.0
  %1031 = vmatpush2.msra.mxu0 0.0
  %1032 = vmatprep.subr.mxu0 0.0
  %1033 = vmatpush2.msra.mxu0 0.0
  %1034 = vmatprep.subr.mxu0 0.0
  %1035 = vmatpush2.msra.mxu0 0.0
  %1036 = vmatprep.subr.mxu0 0.0
  %1037 = vmatpush2.msra.mxu0 0.0
  %1038 = vmatprep.subr.mxu0 0.0
  %1039 = vmatpush2.msra.mxu0 0.0
  %1040 = vmatprep.subr.mxu0 0.0
  %1041 = vmatpush2.msra.mxu0 0.0
  %1042 = vmatprep.subr.mxu0 0.0
  %1043 = vmatpush2.msra.mxu0 0.0
  %1044 = vmatprep.subr.mxu0 0.0
  %1045 = vmatpush2.msra.mxu0 0.0
  %1046 = vmatprep.subr.mxu0 0.0
  %1047 = vmatpush2.msra.mxu0 0.0
  %1048 = vmatprep.subr.mxu0 0.0
  %1049 = vmatpush2.msra.mxu0 0.0
  %1050 = vmatprep.subr.mxu0 0.0
  %1051 = vmatpush2.msra.mxu0 0.0
  %1052 = vmatprep.mubr.f32.mxu0 0.0
  %1053 = vmatmul.mubr.f32.gmra.mxu0 %v983
  %v1054 = vpop.f32.mrf.mxu0
  %v1055 = vadd.f32 %v980, %v1054
  %v1056 = vpop.f32.mrf.mxu0
  %1057 = vmatprep.mubr.f32.mxu0 0.0
  %1058 = vmatmul.mubr.f32.gmra.mxu0 %v986
  %v1059 = vpop.f32.mrf.mxu0
  %v1060 = vadd.f32 %v980, %v1059
  %v1061 = vpop.f32.mrf.mxu0
  %1062 = vdwg.mxu0
  %1063 = vst [vmem:[%s17] sm:$0xff] %v1055
  %1064 = vst [vmem:[%s17 + $0x8] sm:$0xff] %v1060
  // Predicated region
  $region66: #{hetero_gnn_forward.1} parent=0 // pred_check
    _
  $region67: #{hetero_gnn_forward.1} parent=0 // pred_check_branch
    %1066 = sbr.rel (0) target = $region69
  $region68: #{hetero_gnn_forward.1} parent=0 // pred_region
    _
  $region69: #{hetero_gnn_forward.1} parent=0 // pred_fallthru
    _
  // Predicated region
  $region70: #{hetero_gnn_forward.1} parent=0 // pred_check
    _
  $region71: #{hetero_gnn_forward.1} parent=0 // pred_check_branch
    %1068 = sbr.rel (0) target = $region73
  $region72: #{hetero_gnn_forward.1} parent=0 // pred_region
    _
  $region73: #{hetero_gnn_forward.1} parent=0 // pred_fallthru
    _
  // Predicated region
  $region74: #{hetero_gnn_forward.1} parent=0 // pred_check
    _
  $region75: #{hetero_gnn_forward.1} parent=0 // pred_check_branch
    %1070 = sbr.rel (0) target = $region77
  $region76: #{hetero_gnn_forward.1} parent=0 // pred_region
    _
  $region77: #{hetero_gnn_forward.1} parent=0 // pred_fallthru
    _
  // Predicated region
  $region78: #{hetero_gnn_forward.1} parent=0 // pred_check
    _
  $region79: #{hetero_gnn_forward.1} parent=0 // pred_check_branch
    %1072 = sbr.rel (0) target = $region81
  $region80: #{hetero_gnn_forward.1} parent=0 // pred_region
    _
  $region81: #{hetero_gnn_forward.1} parent=0 // pred_fallthru
    _

</llo_original>
